<compile_context>
chip_gen: v6e
topology: v6e:2x2x1
jax: 0.10.0
libtpu: 0.0.40
codegen_flags: <defaults>
</compile_context>

<pallas_src>
import functools

import numpy as np
import jax
import jax.numpy as jnp
from jax import lax
from jax.experimental import pallas as pl
from jax.experimental.pallas import tpu as pltpu


# ----------------------------------------------------------------------------
# Parameter / buffer setup (glue, plain numpy/JAX)
# ----------------------------------------------------------------------------
def make_sinusoid_table(n_position: int, d_hid: int) -> jnp.ndarray:
    """Sinusoid positional encoding table, shape (n_position, d_hid)."""
    pos = np.arange(n_position, dtype=np.float64)[:, None]            # (P, 1)
    hid = np.arange(d_hid, dtype=np.float64)[None, :]                 # (1, D)
    angle = pos / np.power(10000.0, 2.0 * (hid // 2) / d_hid)         # (P, D)
    table = np.zeros_like(angle)
    table[:, 0::2] = np.sin(angle[:, 0::2])
    table[:, 1::2] = np.cos(angle[:, 1::2])
    return jnp.asarray(table, dtype=jnp.float32)


def _pick_batch_tile(B: int, S: int, target_rows: int = 256) -> int:
    """Largest batch tile giving ~target_rows matmul rows, divisor of B,
    while keeping >=2 grid steps (v7x megacore) when B allows."""
    bt = max(1, min(B, target_rows // max(S, 1)))
    while B % bt:
        bt -= 1
    if B >= 2 and B // bt < 2:
        bt = max(1, B // 2)
        while B % bt:
            bt -= 1
    return bt


# ----------------------------------------------------------------------------
# Fused kernel
# ----------------------------------------------------------------------------
def _layer_norm(h, gamma, beta, eps=1e-6):
    mu = jnp.mean(h, axis=-1, keepdims=True)
    var = jnp.mean(jnp.square(h - mu), axis=-1, keepdims=True)
    return (h - mu) * lax.rsqrt(var + eps) * gamma + beta


def _mha_fused_kernel(x_ref, wemb_ref, bemb_ref, pos_ref, g1_ref, b1_ref,
                      wq_ref, wk_ref, wv_ref, wfc_ref, g2_ref, b2_ref,
                      o_ref, *, n_head, b_tile, seq):
    d_src = x_ref.shape[-1]
    d_model = wemb_ref.shape[-1]
    rows = b_tile * seq

    # ---- Embedding: Linear + bias + ReLU (Dropout == identity) ----
    x = x_ref[...].reshape(rows, d_src).astype(jnp.bfloat16)
    e = jnp.dot(x, wemb_ref[...], preferred_element_type=jnp.float32) + bemb_ref[...]
    e = jnp.maximum(e, 0.0)

    # ---- + positional encoding, LayerNorm (f32) ----
    h = _layer_norm(e + pos_ref[...], g1_ref[...], b1_ref[...])        # (rows, D)
    h_bf = h.astype(jnp.bfloat16)

    # ---- Multi-head self-attention: heads indexed on a leading axis ----
    fc = jnp.zeros((rows, d_model), jnp.float32)
    for hh in range(n_head):                                           # static unroll
        # 1/temperature is pre-folded into wq_ref
        qh = jnp.dot(h_bf, wq_ref[hh], preferred_element_type=jnp.float32)
        kh = jnp.dot(h_bf, wk_ref[hh], preferred_element_type=jnp.float32)
        vh = jnp.dot(h_bf, wv_ref[hh], preferred_element_type=jnp.float32)
        q3 = qh.reshape(b_tile, seq, -1).astype(jnp.bfloat16)
        k3 = kh.reshape(b_tile, seq, -1).astype(jnp.bfloat16)
        v3 = vh.reshape(b_tile, seq, -1).astype(jnp.bfloat16)

        # scores per batch in the tile (mask is None in the module forward)
        s = jnp.einsum("bqd,bkd->bqk", q3, k3,
                       preferred_element_type=jnp.float32)             # (b, S, S)
        s = s - jnp.max(s, axis=-1, keepdims=True)
        p = jnp.exp(s)
        p = p * pl.reciprocal(jnp.sum(p, axis=-1, keepdims=True), approx=True)

        o3 = jnp.einsum("bqk,bkd->bqd", p.astype(jnp.bfloat16), v3,
                        preferred_element_type=jnp.float32)            # (b, S, d_v)
        oh = o3.reshape(rows, -1).astype(jnp.bfloat16)
        # concat-free output projection: o_concat @ W_fc == sum_h o_h @ W_fc[h]
        fc = fc + jnp.dot(oh, wfc_ref[hh], preferred_element_type=jnp.float32)

    # ---- + residual, final LayerNorm (Dropout == identity) ----
    out = _layer_norm(fc + h, g2_ref[...], b2_ref[...])
    o_ref[...] = out.reshape(o_ref.shape).astype(o_ref.dtype)


# ----------------------------------------------------------------------------
# Wrapper
# ----------------------------------------------------------------------------
def mha_forward(x, params, pos_table, *, n_head, d_k, d_v):
    """x: (B, S, d_src). Returns enc_output: (B, S, d_model)."""
    B, S, d_src = x.shape
    d_model = params["w_emb"].shape[1]
    n_position = pos_table.shape[0]
    if S > n_position:
        raise ValueError(f"sequence length {S} exceeds n_position {n_position}")
    temperature = float(d_k) ** 0.5

    b_tile = _pick_batch_tile(B, S)
    grid_b = B // b_tile

    # Wrapper-side weight prep: bf16 MXU operands, head-leading layouts,
    # 1/temperature folded into W_q.
    wemb = params["w_emb"].astype(jnp.bfloat16)
    wq_h = (jnp.transpose(params["wq"].reshape(d_model, n_head, d_k), (1, 0, 2))
            / temperature).astype(jnp.bfloat16)                        # (H, D, d_k)
    wk_h = jnp.transpose(params["wk"].reshape(d_model, n_head, d_k),
                         (1, 0, 2)).astype(jnp.bfloat16)               # (H, D, d_k)
    wv_h = jnp.transpose(params["wv"].reshape(d_model, n_head, d_v),
                         (1, 0, 2)).astype(jnp.bfloat16)               # (H, D, d_v)
    wfc_h = params["wfc"].reshape(n_head, d_v, d_model).astype(jnp.bfloat16)
    pos_blk = jnp.tile(pos_table[:S, :], (b_tile, 1))                  # (b_tile*S, D)

    kernel = functools.partial(_mha_fused_kernel, n_head=n_head,
                               b_tile=b_tile, seq=S)

    const2 = lambda b: (0, 0)       # resident 2-D params: same block every step
    const3 = lambda b: (0, 0, 0)    # resident head-leading weights

    return pl.pallas_call(
        kernel,
        out_shape=jax.ShapeDtypeStruct((B, S, d_model), x.dtype),
        grid_spec=pltpu.PrefetchScalarGridSpec(
            num_scalar_prefetch=0,
            grid=(grid_b,),
            in_specs=[
                pl.BlockSpec((b_tile, S, d_src), lambda b: (b, 0, 0)),  # x tile
                pl.BlockSpec((d_src, d_model), const2),                 # W_emb (bf16)
                pl.BlockSpec((1, d_model), const2),                     # b_emb
                pl.BlockSpec((b_tile * S, d_model), const2),            # pos slab
                pl.BlockSpec((1, d_model), const2),                     # LN1 gamma
                pl.BlockSpec((1, d_model), const2),                     # LN1 beta
                pl.BlockSpec((n_head, d_model, d_k), const3),           # W_q (scaled)
                pl.BlockSpec((n_head, d_model, d_k), const3),           # W_k
                pl.BlockSpec((n_head, d_model, d_v), const3),           # W_v
                pl.BlockSpec((n_head, d_v, d_model), const3),           # W_fc
                pl.BlockSpec((1, d_model), const2),                     # LN2 gamma
                pl.BlockSpec((1, d_model), const2),                     # LN2 beta
            ],
            out_specs=pl.BlockSpec((b_tile, S, d_model), lambda b: (b, 0, 0)),
        ),
        compiler_params=pltpu.CompilerParams(
            dimension_semantics=("parallel",),   # batch tiles split over v7x TCs
            vmem_limit_bytes=32 * 1024 * 1024,
        ),
    )(x, wemb, params["b_emb"], pos_blk, params["g1"], params["b1"],
      wq_h, wk_h, wv_h, wfc_h, params["g2"], params["b2"])


# ----------------------------------------------------------------------------
# Pure-JAX f32 reference of the torch forward (inference: dropout = identity)
# ----------------------------------------------------------------------------
def mha_reference(x, params, pos_table, *, n_head, d_k, d_v):
    B, S, _ = x.shape
    temperature = float(d_k) ** 0.5

    e = jnp.maximum(x @ params["w_emb"] + params["b_emb"], 0.0)
    h = _layer_norm(e + pos_table[None, :S, :], params["g1"], params["b1"])

    q = (h @ params["wq"]).reshape(B, S, n_head, d_k).transpose(0, 2, 1, 3)
    k = (h @ params["wk"]).reshape(B, S, n_head, d_k).transpose(0, 2, 1, 3)
    v = (h @ params["wv"]).reshape(B, S, n_head, d_v).transpose(0, 2, 1, 3)

    s = jnp.einsum("bhqd,bhkd->bhqk", q, k) / temperature
    p = jax.nn.softmax(s, axis=-1)
    o = jnp.einsum("bhqk,bhkd->bhqd", p, v)
    o = o.transpose(0, 2, 1, 3).reshape(B, S, n_head * d_v)
    fc = o @ params["wfc"]
    return _layer_norm(fc + h, params["g2"], params["b2"])


# ----------------------------------------------------------------------------
if __name__ == "__main__":
    # Shapes consistent with the module: batch=2, seq=8, d_src=16, d_hidden=32,
    # n_head=4 (d_k = d_v = d_model = d_hidden, so n_head*d_k = 128).
    B, S = 2, 8
    D_SRC, D_MODEL = 16, 32
    N_HEAD = 4
    D_K = D_V = D_MODEL
    N_POSITION = 500

    key = jax.random.PRNGKey(0)
    ks = jax.random.split(key, 10)
    sc = 0.1
    x = jax.random.normal(ks[0], (B, S, D_SRC), dtype=jnp.float32)

    params = dict(
        w_emb=sc * jax.random.normal(ks[1], (D_SRC, D_MODEL), jnp.float32),
        b_emb=sc * jax.random.normal(ks[2], (1, D_MODEL), jnp.float32),
        g1=1.0 + sc * jax.random.normal(ks[3], (1, D_MODEL), jnp.float32),
        b1=sc * jax.random.normal(ks[4], (1, D_MODEL), jnp.float32),
        wq=sc * jax.random.normal(ks[5], (D_MODEL, N_HEAD * D_K), jnp.float32),
        wk=sc * jax.random.normal(ks[6], (D_MODEL, N_HEAD * D_K), jnp.float32),
        wv=sc * jax.random.normal(ks[7], (D_MODEL, N_HEAD * D_V), jnp.float32),
        wfc=sc * jax.random.normal(ks[8], (N_HEAD * D_V, D_MODEL), jnp.float32),
        g2=1.0 + sc * jax.random.normal(ks[9], (1, D_MODEL), jnp.float32),
        b2=jnp.zeros((1, D_MODEL), jnp.float32),
    )
    pos_table = make_sinusoid_table(N_POSITION, D_MODEL)

    out = mha_forward(x, params, pos_table, n_head=N_HEAD, d_k=D_K, d_v=D_V)
    out = jax.block_until_ready(out)

    ref = mha_reference(x, params, pos_table, n_head=N_HEAD, d_k=D_K, d_v=D_V)
    ref = jax.block_until_ready(ref)

    assert out.shape == (B, S, D_MODEL)
    # Kernel uses bf16 MXU operands with f32 accumulation -> looser tolerance
    # than a pure-f32 bitwise match.
    np.testing.assert_allclose(np.asarray(out), np.asarray(ref),
                               rtol=5e-2, atol=5e-2)

    print("KERNEL_OK")
</pallas_src>

<mosaic_0001>
module attributes {stable_mosaic.version = 11 : i64} {
  func.func @_mha_fused_kernel(%arg0: i32, %arg1: memref<1x8x16xf32, #tpu.memory_space<vmem>>, %arg2: memref<16x32xbf16, #tpu.memory_space<vmem>>, %arg3: memref<1x32xf32, #tpu.memory_space<vmem>>, %arg4: memref<8x32xf32, #tpu.memory_space<vmem>>, %arg5: memref<1x32xf32, #tpu.memory_space<vmem>>, %arg6: memref<1x32xf32, #tpu.memory_space<vmem>>, %arg7: memref<4x32x32xbf16, #tpu.memory_space<vmem>>, %arg8: memref<4x32x32xbf16, #tpu.memory_space<vmem>>, %arg9: memref<4x32x32xbf16, #tpu.memory_space<vmem>>, %arg10: memref<4x32x32xbf16, #tpu.memory_space<vmem>>, %arg11: memref<1x32xf32, #tpu.memory_space<vmem>>, %arg12: memref<1x32xf32, #tpu.memory_space<vmem>>, %arg13: memref<1x8x32xf32, #tpu.memory_space<vmem>>) attributes {dimension_semantics = [#tpu.dimension_semantics<parallel>], iteration_bounds = array<i64: 2>, scalar_prefetch = 0 : i64, scratch_operands = 0 : i64, tpu.core_type = #tpu.core_type<tc>, window_params = [{transform_indices = @transform_0, window_bounds = array<i64: 1, 8, 16>}, {pipeline_mode = #tpu.pipeline_mode<synchronous>, transform_indices = @transform_1, window_bounds = array<i64: 16, 32>}, {pipeline_mode = #tpu.pipeline_mode<synchronous>, transform_indices = @transform_2, window_bounds = array<i64: 1, 32>}, {pipeline_mode = #tpu.pipeline_mode<synchronous>, transform_indices = @transform_3, window_bounds = array<i64: 8, 32>}, {pipeline_mode = #tpu.pipeline_mode<synchronous>, transform_indices = @transform_4, window_bounds = array<i64: 1, 32>}, {pipeline_mode = #tpu.pipeline_mode<synchronous>, transform_indices = @transform_5, window_bounds = array<i64: 1, 32>}, {pipeline_mode = #tpu.pipeline_mode<synchronous>, transform_indices = @transform_6, window_bounds = array<i64: 4, 32, 32>}, {pipeline_mode = #tpu.pipeline_mode<synchronous>, transform_indices = @transform_7, window_bounds = array<i64: 4, 32, 32>}, {pipeline_mode = #tpu.pipeline_mode<synchronous>, transform_indices = @transform_8, window_bounds = array<i64: 4, 32, 32>}, {pipeline_mode = #tpu.pipeline_mode<synchronous>, transform_indices = @transform_9, window_bounds = array<i64: 4, 32, 32>}, {pipeline_mode = #tpu.pipeline_mode<synchronous>, transform_indices = @transform_10, window_bounds = array<i64: 1, 32>}, {pipeline_mode = #tpu.pipeline_mode<synchronous>, transform_indices = @transform_11, window_bounds = array<i64: 1, 32>}, {transform_indices = @transform_12, window_bounds = array<i64: 1, 8, 32>}]} {
    %c0 = arith.constant 0 : index
    %c0_0 = arith.constant 0 : index
    %c0_1 = arith.constant 0 : index
    %0 = vector.load %arg1[%c0, %c0_0, %c0_1] : memref<1x8x16xf32, #tpu.memory_space<vmem>>, vector<1x8x16xf32>
    %1 = vector.shape_cast %0 : vector<1x8x16xf32> to vector<8x16xf32>
    %2 = arith.truncf %1 : vector<8x16xf32> to vector<8x16xbf16>
    %c0_2 = arith.constant 0 : index
    %c0_3 = arith.constant 0 : index
    %3 = vector.load %arg2[%c0_2, %c0_3] : memref<16x32xbf16, #tpu.memory_space<vmem>>, vector<16x32xbf16>
    %cst = arith.constant dense<0.000000e+00> : vector<8x32xf32>
    %4 = tpu.matmul %2, %3, %cst {dimension_numbers = #tpu.dot_dimension_numbers<[1], [0], [0], [1], [0, 0, 1, 1], [], []>} : vector<8x16xbf16>, vector<16x32xbf16>, vector<8x32xf32> -> vector<8x32xf32>
    %c0_4 = arith.constant 0 : index
    %c0_5 = arith.constant 0 : index
    %5 = vector.load %arg3[%c0_4, %c0_5] : memref<1x32xf32, #tpu.memory_space<vmem>>, vector<1x32xf32>
    %6 = vector.broadcast %5 : vector<1x32xf32> to vector<8x32xf32>
    %7 = arith.addf %4, %6 : vector<8x32xf32>
    %cst_6 = arith.constant 0.000000e+00 : f32
    %8 = vector.broadcast %cst_6 : f32 to vector<8x32xf32>
    %9 = arith.maximumf %7, %8 : vector<8x32xf32>
    %c0_7 = arith.constant 0 : index
    %c0_8 = arith.constant 0 : index
    %10 = vector.load %arg4[%c0_7, %c0_8] : memref<8x32xf32, #tpu.memory_space<vmem>>, vector<8x32xf32>
    %11 = arith.addf %9, %10 : vector<8x32xf32>
    %c0_9 = arith.constant 0 : index
    %c0_10 = arith.constant 0 : index
    %12 = vector.load %arg5[%c0_9, %c0_10] : memref<1x32xf32, #tpu.memory_space<vmem>>, vector<1x32xf32>
    %c0_11 = arith.constant 0 : index
    %c0_12 = arith.constant 0 : index
    %13 = vector.load %arg6[%c0_11, %c0_12] : memref<1x32xf32, #tpu.memory_space<vmem>>, vector<1x32xf32>
    %cst_13 = arith.constant dense<0.000000e+00> : vector<8xf32>
    %14 = vector.multi_reduction <add>, %11, %cst_13 [1] : vector<8x32xf32> to vector<8xf32>
    %15 = vector.shape_cast %14 : vector<8xf32> to vector<8x1xf32>
    %cst_14 = arith.constant 3.200000e+01 : f32
    %16 = vector.broadcast %cst_14 : f32 to vector<8x1xf32>
    %17 = arith.divf %15, %16 : vector<8x1xf32>
    %18 = vector.broadcast %17 : vector<8x1xf32> to vector<8x32xf32>
    %19 = arith.subf %11, %18 : vector<8x32xf32>
    %20 = arith.mulf %19, %19 : vector<8x32xf32>
    %cst_15 = arith.constant dense<0.000000e+00> : vector<8xf32>
    %21 = vector.multi_reduction <add>, %20, %cst_15 [1] : vector<8x32xf32> to vector<8xf32>
    %22 = vector.shape_cast %21 : vector<8xf32> to vector<8x1xf32>
    %cst_16 = arith.constant 3.200000e+01 : f32
    %23 = vector.broadcast %cst_16 : f32 to vector<8x1xf32>
    %24 = arith.divf %22, %23 : vector<8x1xf32>
    %25 = vector.broadcast %17 : vector<8x1xf32> to vector<8x32xf32>
    %26 = arith.subf %11, %25 : vector<8x32xf32>
    %cst_17 = arith.constant 9.99999997E-7 : f32
    %27 = vector.broadcast %cst_17 : f32 to vector<8x1xf32>
    %28 = arith.addf %24, %27 : vector<8x1xf32>
    %29 = math.rsqrt %28 : vector<8x1xf32>
    %30 = vector.broadcast %29 : vector<8x1xf32> to vector<8x32xf32>
    %31 = arith.mulf %26, %30 : vector<8x32xf32>
    %32 = vector.broadcast %12 : vector<1x32xf32> to vector<8x32xf32>
    %33 = arith.mulf %31, %32 : vector<8x32xf32>
    %34 = vector.broadcast %13 : vector<1x32xf32> to vector<8x32xf32>
    %35 = arith.addf %33, %34 : vector<8x32xf32>
    %36 = arith.truncf %35 : vector<8x32xf32> to vector<8x32xbf16>
    %cst_18 = arith.constant 0.000000e+00 : f32
    %37 = vector.broadcast %cst_18 : f32 to vector<8x32xf32>
    %c0_19 = arith.constant 0 : index
    %c0_20 = arith.constant 0 : index
    %c0_21 = arith.constant 0 : index
    %38 = vector.load %arg7[%c0_19, %c0_20, %c0_21] : memref<4x32x32xbf16, #tpu.memory_space<vmem>>, vector<1x32x32xbf16>
    %39 = vector.shape_cast %38 : vector<1x32x32xbf16> to vector<32x32xbf16>
    %cst_22 = arith.constant dense<0.000000e+00> : vector<8x32xf32>
    %40 = tpu.matmul %36, %39, %cst_22 {dimension_numbers = #tpu.dot_dimension_numbers<[1], [0], [0], [1], [0, 0, 1, 1], [], []>} : vector<8x32xbf16>, vector<32x32xbf16>, vector<8x32xf32> -> vector<8x32xf32>
    %c0_23 = arith.constant 0 : index
    %c0_24 = arith.constant 0 : index
    %c0_25 = arith.constant 0 : index
    %41 = vector.load %arg8[%c0_23, %c0_24, %c0_25] : memref<4x32x32xbf16, #tpu.memory_space<vmem>>, vector<1x32x32xbf16>
    %42 = vector.shape_cast %41 : vector<1x32x32xbf16> to vector<32x32xbf16>
    %cst_26 = arith.constant dense<0.000000e+00> : vector<8x32xf32>
    %43 = tpu.matmul %36, %42, %cst_26 {dimension_numbers = #tpu.dot_dimension_numbers<[1], [0], [0], [1], [0, 0, 1, 1], [], []>} : vector<8x32xbf16>, vector<32x32xbf16>, vector<8x32xf32> -> vector<8x32xf32>
    %c0_27 = arith.constant 0 : index
    %c0_28 = arith.constant 0 : index
    %c0_29 = arith.constant 0 : index
    %44 = vector.load %arg9[%c0_27, %c0_28, %c0_29] : memref<4x32x32xbf16, #tpu.memory_space<vmem>>, vector<1x32x32xbf16>
    %45 = vector.shape_cast %44 : vector<1x32x32xbf16> to vector<32x32xbf16>
    %cst_30 = arith.constant dense<0.000000e+00> : vector<8x32xf32>
    %46 = tpu.matmul %36, %45, %cst_30 {dimension_numbers = #tpu.dot_dimension_numbers<[1], [0], [0], [1], [0, 0, 1, 1], [], []>} : vector<8x32xbf16>, vector<32x32xbf16>, vector<8x32xf32> -> vector<8x32xf32>
    %47 = vector.shape_cast %40 : vector<8x32xf32> to vector<1x8x32xf32>
    %48 = arith.truncf %47 : vector<1x8x32xf32> to vector<1x8x32xbf16>
    %49 = vector.shape_cast %43 : vector<8x32xf32> to vector<1x8x32xf32>
    %50 = arith.truncf %49 : vector<1x8x32xf32> to vector<1x8x32xbf16>
    %51 = vector.shape_cast %46 : vector<8x32xf32> to vector<1x8x32xf32>
    %52 = arith.truncf %51 : vector<1x8x32xf32> to vector<1x8x32xbf16>
    "tpu.trace_start"() <{level = 10 : i32, message = "bqd,bkd->bqk"}> : () -> ()
    %cst_31 = arith.constant dense<0.000000e+00> : vector<1x8x8xf32>
    %53 = tpu.matmul %48, %50, %cst_31 {dimension_numbers = #tpu.dot_dimension_numbers<[2], [2], [1], [1], [0, 0, 0, 1, 1, 1], [0], [0]>} : vector<1x8x32xbf16>, vector<1x8x32xbf16>, vector<1x8x8xf32> -> vector<1x8x8xf32>
    "tpu.trace_stop"() : () -> ()
    %cst_32 = arith.constant dense<0xFF800000> : vector<1x8xf32>
    %54 = vector.multi_reduction <maximumf>, %53, %cst_32 [2] : vector<1x8x8xf32> to vector<1x8xf32>
    %55 = vector.shape_cast %54 : vector<1x8xf32> to vector<1x8x1xf32>
    %56 = vector.broadcast %55 : vector<1x8x1xf32> to vector<1x8x8xf32>
    %57 = arith.subf %53, %56 : vector<1x8x8xf32>
    %58 = math.exp %57 : vector<1x8x8xf32>
    %cst_33 = arith.constant dense<0.000000e+00> : vector<1x8xf32>
    %59 = vector.multi_reduction <add>, %58, %cst_33 [2] : vector<1x8x8xf32> to vector<1x8xf32>
    %60 = vector.shape_cast %59 : vector<1x8xf32> to vector<1x8x1xf32>
    %61 = tpu.reciprocal %60 {approx = true} : vector<1x8x1xf32> -> vector<1x8x1xf32>
    %62 = vector.broadcast %61 : vector<1x8x1xf32> to vector<1x8x8xf32>
    %63 = arith.mulf %58, %62 : vector<1x8x8xf32>
    %64 = arith.truncf %63 : vector<1x8x8xf32> to vector<1x8x8xbf16>
    "tpu.trace_start"() <{level = 10 : i32, message = "bqk,bkd->bqd"}> : () -> ()
    %cst_34 = arith.constant dense<0.000000e+00> : vector<1x8x32xf32>
    %65 = tpu.matmul %64, %52, %cst_34 {dimension_numbers = #tpu.dot_dimension_numbers<[2], [1], [1], [2], [0, 0, 0, 1, 1, 2], [0], [0]>} : vector<1x8x8xbf16>, vector<1x8x32xbf16>, vector<1x8x32xf32> -> vector<1x8x32xf32>
    "tpu.trace_stop"() : () -> ()
    %66 = vector.shape_cast %65 : vector<1x8x32xf32> to vector<8x32xf32>
    %67 = arith.truncf %66 : vector<8x32xf32> to vector<8x32xbf16>
    %c0_35 = arith.constant 0 : index
    %c0_36 = arith.constant 0 : index
    %c0_37 = arith.constant 0 : index
    %68 = vector.load %arg10[%c0_35, %c0_36, %c0_37] : memref<4x32x32xbf16, #tpu.memory_space<vmem>>, vector<1x32x32xbf16>
    %69 = vector.shape_cast %68 : vector<1x32x32xbf16> to vector<32x32xbf16>
    %cst_38 = arith.constant dense<0.000000e+00> : vector<8x32xf32>
    %70 = tpu.matmul %67, %69, %cst_38 {dimension_numbers = #tpu.dot_dimension_numbers<[1], [0], [0], [1], [0, 0, 1, 1], [], []>} : vector<8x32xbf16>, vector<32x32xbf16>, vector<8x32xf32> -> vector<8x32xf32>
    %71 = arith.addf %37, %70 : vector<8x32xf32>
    %c1 = arith.constant 1 : index
    %c0_39 = arith.constant 0 : index
    %c0_40 = arith.constant 0 : index
    %72 = vector.load %arg7[%c1, %c0_39, %c0_40] : memref<4x32x32xbf16, #tpu.memory_space<vmem>>, vector<1x32x32xbf16>
    %73 = vector.shape_cast %72 : vector<1x32x32xbf16> to vector<32x32xbf16>
    %cst_41 = arith.constant dense<0.000000e+00> : vector<8x32xf32>
    %74 = tpu.matmul %36, %73, %cst_41 {dimension_numbers = #tpu.dot_dimension_numbers<[1], [0], [0], [1], [0, 0, 1, 1], [], []>} : vector<8x32xbf16>, vector<32x32xbf16>, vector<8x32xf32> -> vector<8x32xf32>
    %c1_42 = arith.constant 1 : index
    %c0_43 = arith.constant 0 : index
    %c0_44 = arith.constant 0 : index
    %75 = vector.load %arg8[%c1_42, %c0_43, %c0_44] : memref<4x32x32xbf16, #tpu.memory_space<vmem>>, vector<1x32x32xbf16>
    %76 = vector.shape_cast %75 : vector<1x32x32xbf16> to vector<32x32xbf16>
    %cst_45 = arith.constant dense<0.000000e+00> : vector<8x32xf32>
    %77 = tpu.matmul %36, %76, %cst_45 {dimension_numbers = #tpu.dot_dimension_numbers<[1], [0], [0], [1], [0, 0, 1, 1], [], []>} : vector<8x32xbf16>, vector<32x32xbf16>, vector<8x32xf32> -> vector<8x32xf32>
    %c1_46 = arith.constant 1 : index
    %c0_47 = arith.constant 0 : index
    %c0_48 = arith.constant 0 : index
    %78 = vector.load %arg9[%c1_46, %c0_47, %c0_48] : memref<4x32x32xbf16, #tpu.memory_space<vmem>>, vector<1x32x32xbf16>
    %79 = vector.shape_cast %78 : vector<1x32x32xbf16> to vector<32x32xbf16>
    %cst_49 = arith.constant dense<0.000000e+00> : vector<8x32xf32>
    %80 = tpu.matmul %36, %79, %cst_49 {dimension_numbers = #tpu.dot_dimension_numbers<[1], [0], [0], [1], [0, 0, 1, 1], [], []>} : vector<8x32xbf16>, vector<32x32xbf16>, vector<8x32xf32> -> vector<8x32xf32>
    %81 = vector.shape_cast %74 : vector<8x32xf32> to vector<1x8x32xf32>
    %82 = arith.truncf %81 : vector<1x8x32xf32> to vector<1x8x32xbf16>
    %83 = vector.shape_cast %77 : vector<8x32xf32> to vector<1x8x32xf32>
    %84 = arith.truncf %83 : vector<1x8x32xf32> to vector<1x8x32xbf16>
    %85 = vector.shape_cast %80 : vector<8x32xf32> to vector<1x8x32xf32>
    %86 = arith.truncf %85 : vector<1x8x32xf32> to vector<1x8x32xbf16>
    "tpu.trace_start"() <{level = 10 : i32, message = "bqd,bkd->bqk"}> : () -> ()
    %cst_50 = arith.constant dense<0.000000e+00> : vector<1x8x8xf32>
    %87 = tpu.matmul %82, %84, %cst_50 {dimension_numbers = #tpu.dot_dimension_numbers<[2], [2], [1], [1], [0, 0, 0, 1, 1, 1], [0], [0]>} : vector<1x8x32xbf16>, vector<1x8x32xbf16>, vector<1x8x8xf32> -> vector<1x8x8xf32>
    "tpu.trace_stop"() : () -> ()
    %cst_51 = arith.constant dense<0xFF800000> : vector<1x8xf32>
    %88 = vector.multi_reduction <maximumf>, %87, %cst_51 [2] : vector<1x8x8xf32> to vector<1x8xf32>
    %89 = vector.shape_cast %88 : vector<1x8xf32> to vector<1x8x1xf32>
    %90 = vector.broadcast %89 : vector<1x8x1xf32> to vector<1x8x8xf32>
    %91 = arith.subf %87, %90 : vector<1x8x8xf32>
    %92 = math.exp %91 : vector<1x8x8xf32>
    %cst_52 = arith.constant dense<0.000000e+00> : vector<1x8xf32>
    %93 = vector.multi_reduction <add>, %92, %cst_52 [2] : vector<1x8x8xf32> to vector<1x8xf32>
    %94 = vector.shape_cast %93 : vector<1x8xf32> to vector<1x8x1xf32>
    %95 = tpu.reciprocal %94 {approx = true} : vector<1x8x1xf32> -> vector<1x8x1xf32>
    %96 = vector.broadcast %95 : vector<1x8x1xf32> to vector<1x8x8xf32>
    %97 = arith.mulf %92, %96 : vector<1x8x8xf32>
    %98 = arith.truncf %97 : vector<1x8x8xf32> to vector<1x8x8xbf16>
    "tpu.trace_start"() <{level = 10 : i32, message = "bqk,bkd->bqd"}> : () -> ()
    %cst_53 = arith.constant dense<0.000000e+00> : vector<1x8x32xf32>
    %99 = tpu.matmul %98, %86, %cst_53 {dimension_numbers = #tpu.dot_dimension_numbers<[2], [1], [1], [2], [0, 0, 0, 1, 1, 2], [0], [0]>} : vector<1x8x8xbf16>, vector<1x8x32xbf16>, vector<1x8x32xf32> -> vector<1x8x32xf32>
    "tpu.trace_stop"() : () -> ()
    %100 = vector.shape_cast %99 : vector<1x8x32xf32> to vector<8x32xf32>
    %101 = arith.truncf %100 : vector<8x32xf32> to vector<8x32xbf16>
    %c1_54 = arith.constant 1 : index
    %c0_55 = arith.constant 0 : index
    %c0_56 = arith.constant 0 : index
    %102 = vector.load %arg10[%c1_54, %c0_55, %c0_56] : memref<4x32x32xbf16, #tpu.memory_space<vmem>>, vector<1x32x32xbf16>
    %103 = vector.shape_cast %102 : vector<1x32x32xbf16> to vector<32x32xbf16>
    %cst_57 = arith.constant dense<0.000000e+00> : vector<8x32xf32>
    %104 = tpu.matmul %101, %103, %cst_57 {dimension_numbers = #tpu.dot_dimension_numbers<[1], [0], [0], [1], [0, 0, 1, 1], [], []>} : vector<8x32xbf16>, vector<32x32xbf16>, vector<8x32xf32> -> vector<8x32xf32>
    %105 = arith.addf %71, %104 : vector<8x32xf32>
    %c2 = arith.constant 2 : index
    %c0_58 = arith.constant 0 : index
    %c0_59 = arith.constant 0 : index
    %106 = vector.load %arg7[%c2, %c0_58, %c0_59] : memref<4x32x32xbf16, #tpu.memory_space<vmem>>, vector<1x32x32xbf16>
    %107 = vector.shape_cast %106 : vector<1x32x32xbf16> to vector<32x32xbf16>
    %cst_60 = arith.constant dense<0.000000e+00> : vector<8x32xf32>
    %108 = tpu.matmul %36, %107, %cst_60 {dimension_numbers = #tpu.dot_dimension_numbers<[1], [0], [0], [1], [0, 0, 1, 1], [], []>} : vector<8x32xbf16>, vector<32x32xbf16>, vector<8x32xf32> -> vector<8x32xf32>
    %c2_61 = arith.constant 2 : index
    %c0_62 = arith.constant 0 : index
    %c0_63 = arith.constant 0 : index
    %109 = vector.load %arg8[%c2_61, %c0_62, %c0_63] : memref<4x32x32xbf16, #tpu.memory_space<vmem>>, vector<1x32x32xbf16>
    %110 = vector.shape_cast %109 : vector<1x32x32xbf16> to vector<32x32xbf16>
    %cst_64 = arith.constant dense<0.000000e+00> : vector<8x32xf32>
    %111 = tpu.matmul %36, %110, %cst_64 {dimension_numbers = #tpu.dot_dimension_numbers<[1], [0], [0], [1], [0, 0, 1, 1], [], []>} : vector<8x32xbf16>, vector<32x32xbf16>, vector<8x32xf32> -> vector<8x32xf32>
    %c2_65 = arith.constant 2 : index
    %c0_66 = arith.constant 0 : index
    %c0_67 = arith.constant 0 : index
    %112 = vector.load %arg9[%c2_65, %c0_66, %c0_67] : memref<4x32x32xbf16, #tpu.memory_space<vmem>>, vector<1x32x32xbf16>
    %113 = vector.shape_cast %112 : vector<1x32x32xbf16> to vector<32x32xbf16>
    %cst_68 = arith.constant dense<0.000000e+00> : vector<8x32xf32>
    %114 = tpu.matmul %36, %113, %cst_68 {dimension_numbers = #tpu.dot_dimension_numbers<[1], [0], [0], [1], [0, 0, 1, 1], [], []>} : vector<8x32xbf16>, vector<32x32xbf16>, vector<8x32xf32> -> vector<8x32xf32>
    %115 = vector.shape_cast %108 : vector<8x32xf32> to vector<1x8x32xf32>
    %116 = arith.truncf %115 : vector<1x8x32xf32> to vector<1x8x32xbf16>
    %117 = vector.shape_cast %111 : vector<8x32xf32> to vector<1x8x32xf32>
    %118 = arith.truncf %117 : vector<1x8x32xf32> to vector<1x8x32xbf16>
    %119 = vector.shape_cast %114 : vector<8x32xf32> to vector<1x8x32xf32>
    %120 = arith.truncf %119 : vector<1x8x32xf32> to vector<1x8x32xbf16>
    "tpu.trace_start"() <{level = 10 : i32, message = "bqd,bkd->bqk"}> : () -> ()
    %cst_69 = arith.constant dense<0.000000e+00> : vector<1x8x8xf32>
    %121 = tpu.matmul %116, %118, %cst_69 {dimension_numbers = #tpu.dot_dimension_numbers<[2], [2], [1], [1], [0, 0, 0, 1, 1, 1], [0], [0]>} : vector<1x8x32xbf16>, vector<1x8x32xbf16>, vector<1x8x8xf32> -> vector<1x8x8xf32>
    "tpu.trace_stop"() : () -> ()
    %cst_70 = arith.constant dense<0xFF800000> : vector<1x8xf32>
    %122 = vector.multi_reduction <maximumf>, %121, %cst_70 [2] : vector<1x8x8xf32> to vector<1x8xf32>
    %123 = vector.shape_cast %122 : vector<1x8xf32> to vector<1x8x1xf32>
    %124 = vector.broadcast %123 : vector<1x8x1xf32> to vector<1x8x8xf32>
    %125 = arith.subf %121, %124 : vector<1x8x8xf32>
    %126 = math.exp %125 : vector<1x8x8xf32>
    %cst_71 = arith.constant dense<0.000000e+00> : vector<1x8xf32>
    %127 = vector.multi_reduction <add>, %126, %cst_71 [2] : vector<1x8x8xf32> to vector<1x8xf32>
    %128 = vector.shape_cast %127 : vector<1x8xf32> to vector<1x8x1xf32>
    %129 = tpu.reciprocal %128 {approx = true} : vector<1x8x1xf32> -> vector<1x8x1xf32>
    %130 = vector.broadcast %129 : vector<1x8x1xf32> to vector<1x8x8xf32>
    %131 = arith.mulf %126, %130 : vector<1x8x8xf32>
    %132 = arith.truncf %131 : vector<1x8x8xf32> to vector<1x8x8xbf16>
    "tpu.trace_start"() <{level = 10 : i32, message = "bqk,bkd->bqd"}> : () -> ()
    %cst_72 = arith.constant dense<0.000000e+00> : vector<1x8x32xf32>
    %133 = tpu.matmul %132, %120, %cst_72 {dimension_numbers = #tpu.dot_dimension_numbers<[2], [1], [1], [2], [0, 0, 0, 1, 1, 2], [0], [0]>} : vector<1x8x8xbf16>, vector<1x8x32xbf16>, vector<1x8x32xf32> -> vector<1x8x32xf32>
    "tpu.trace_stop"() : () -> ()
    %134 = vector.shape_cast %133 : vector<1x8x32xf32> to vector<8x32xf32>
    %135 = arith.truncf %134 : vector<8x32xf32> to vector<8x32xbf16>
    %c2_73 = arith.constant 2 : index
    %c0_74 = arith.constant 0 : index
    %c0_75 = arith.constant 0 : index
    %136 = vector.load %arg10[%c2_73, %c0_74, %c0_75] : memref<4x32x32xbf16, #tpu.memory_space<vmem>>, vector<1x32x32xbf16>
    %137 = vector.shape_cast %136 : vector<1x32x32xbf16> to vector<32x32xbf16>
    %cst_76 = arith.constant dense<0.000000e+00> : vector<8x32xf32>
    %138 = tpu.matmul %135, %137, %cst_76 {dimension_numbers = #tpu.dot_dimension_numbers<[1], [0], [0], [1], [0, 0, 1, 1], [], []>} : vector<8x32xbf16>, vector<32x32xbf16>, vector<8x32xf32> -> vector<8x32xf32>
    %139 = arith.addf %105, %138 : vector<8x32xf32>
    %c3 = arith.constant 3 : index
    %c0_77 = arith.constant 0 : index
    %c0_78 = arith.constant 0 : index
    %140 = vector.load %arg7[%c3, %c0_77, %c0_78] : memref<4x32x32xbf16, #tpu.memory_space<vmem>>, vector<1x32x32xbf16>
    %141 = vector.shape_cast %140 : vector<1x32x32xbf16> to vector<32x32xbf16>
    %cst_79 = arith.constant dense<0.000000e+00> : vector<8x32xf32>
    %142 = tpu.matmul %36, %141, %cst_79 {dimension_numbers = #tpu.dot_dimension_numbers<[1], [0], [0], [1], [0, 0, 1, 1], [], []>} : vector<8x32xbf16>, vector<32x32xbf16>, vector<8x32xf32> -> vector<8x32xf32>
    %c3_80 = arith.constant 3 : index
    %c0_81 = arith.constant 0 : index
    %c0_82 = arith.constant 0 : index
    %143 = vector.load %arg8[%c3_80, %c0_81, %c0_82] : memref<4x32x32xbf16, #tpu.memory_space<vmem>>, vector<1x32x32xbf16>
    %144 = vector.shape_cast %143 : vector<1x32x32xbf16> to vector<32x32xbf16>
    %cst_83 = arith.constant dense<0.000000e+00> : vector<8x32xf32>
    %145 = tpu.matmul %36, %144, %cst_83 {dimension_numbers = #tpu.dot_dimension_numbers<[1], [0], [0], [1], [0, 0, 1, 1], [], []>} : vector<8x32xbf16>, vector<32x32xbf16>, vector<8x32xf32> -> vector<8x32xf32>
    %c3_84 = arith.constant 3 : index
    %c0_85 = arith.constant 0 : index
    %c0_86 = arith.constant 0 : index
    %146 = vector.load %arg9[%c3_84, %c0_85, %c0_86] : memref<4x32x32xbf16, #tpu.memory_space<vmem>>, vector<1x32x32xbf16>
    %147 = vector.shape_cast %146 : vector<1x32x32xbf16> to vector<32x32xbf16>
    %cst_87 = arith.constant dense<0.000000e+00> : vector<8x32xf32>
    %148 = tpu.matmul %36, %147, %cst_87 {dimension_numbers = #tpu.dot_dimension_numbers<[1], [0], [0], [1], [0, 0, 1, 1], [], []>} : vector<8x32xbf16>, vector<32x32xbf16>, vector<8x32xf32> -> vector<8x32xf32>
    %149 = vector.shape_cast %142 : vector<8x32xf32> to vector<1x8x32xf32>
    %150 = arith.truncf %149 : vector<1x8x32xf32> to vector<1x8x32xbf16>
    %151 = vector.shape_cast %145 : vector<8x32xf32> to vector<1x8x32xf32>
    %152 = arith.truncf %151 : vector<1x8x32xf32> to vector<1x8x32xbf16>
    %153 = vector.shape_cast %148 : vector<8x32xf32> to vector<1x8x32xf32>
    %154 = arith.truncf %153 : vector<1x8x32xf32> to vector<1x8x32xbf16>
    "tpu.trace_start"() <{level = 10 : i32, message = "bqd,bkd->bqk"}> : () -> ()
    %cst_88 = arith.constant dense<0.000000e+00> : vector<1x8x8xf32>
    %155 = tpu.matmul %150, %152, %cst_88 {dimension_numbers = #tpu.dot_dimension_numbers<[2], [2], [1], [1], [0, 0, 0, 1, 1, 1], [0], [0]>} : vector<1x8x32xbf16>, vector<1x8x32xbf16>, vector<1x8x8xf32> -> vector<1x8x8xf32>
    "tpu.trace_stop"() : () -> ()
    %cst_89 = arith.constant dense<0xFF800000> : vector<1x8xf32>
    %156 = vector.multi_reduction <maximumf>, %155, %cst_89 [2] : vector<1x8x8xf32> to vector<1x8xf32>
    %157 = vector.shape_cast %156 : vector<1x8xf32> to vector<1x8x1xf32>
    %158 = vector.broadcast %157 : vector<1x8x1xf32> to vector<1x8x8xf32>
    %159 = arith.subf %155, %158 : vector<1x8x8xf32>
    %160 = math.exp %159 : vector<1x8x8xf32>
    %cst_90 = arith.constant dense<0.000000e+00> : vector<1x8xf32>
    %161 = vector.multi_reduction <add>, %160, %cst_90 [2] : vector<1x8x8xf32> to vector<1x8xf32>
    %162 = vector.shape_cast %161 : vector<1x8xf32> to vector<1x8x1xf32>
    %163 = tpu.reciprocal %162 {approx = true} : vector<1x8x1xf32> -> vector<1x8x1xf32>
    %164 = vector.broadcast %163 : vector<1x8x1xf32> to vector<1x8x8xf32>
    %165 = arith.mulf %160, %164 : vector<1x8x8xf32>
    %166 = arith.truncf %165 : vector<1x8x8xf32> to vector<1x8x8xbf16>
    "tpu.trace_start"() <{level = 10 : i32, message = "bqk,bkd->bqd"}> : () -> ()
    %cst_91 = arith.constant dense<0.000000e+00> : vector<1x8x32xf32>
    %167 = tpu.matmul %166, %154, %cst_91 {dimension_numbers = #tpu.dot_dimension_numbers<[2], [1], [1], [2], [0, 0, 0, 1, 1, 2], [0], [0]>} : vector<1x8x8xbf16>, vector<1x8x32xbf16>, vector<1x8x32xf32> -> vector<1x8x32xf32>
    "tpu.trace_stop"() : () -> ()
    %168 = vector.shape_cast %167 : vector<1x8x32xf32> to vector<8x32xf32>
    %169 = arith.truncf %168 : vector<8x32xf32> to vector<8x32xbf16>
    %c3_92 = arith.constant 3 : index
    %c0_93 = arith.constant 0 : index
    %c0_94 = arith.constant 0 : index
    %170 = vector.load %arg10[%c3_92, %c0_93, %c0_94] : memref<4x32x32xbf16, #tpu.memory_space<vmem>>, vector<1x32x32xbf16>
    %171 = vector.shape_cast %170 : vector<1x32x32xbf16> to vector<32x32xbf16>
    %cst_95 = arith.constant dense<0.000000e+00> : vector<8x32xf32>
    %172 = tpu.matmul %169, %171, %cst_95 {dimension_numbers = #tpu.dot_dimension_numbers<[1], [0], [0], [1], [0, 0, 1, 1], [], []>} : vector<8x32xbf16>, vector<32x32xbf16>, vector<8x32xf32> -> vector<8x32xf32>
    %173 = arith.addf %139, %172 : vector<8x32xf32>
    %174 = arith.addf %173, %35 : vector<8x32xf32>
    %c0_96 = arith.constant 0 : index
    %c0_97 = arith.constant 0 : index
    %175 = vector.load %arg11[%c0_96, %c0_97] : memref<1x32xf32, #tpu.memory_space<vmem>>, vector<1x32xf32>
    %c0_98 = arith.constant 0 : index
    %c0_99 = arith.constant 0 : index
    %176 = vector.load %arg12[%c0_98, %c0_99] : memref<1x32xf32, #tpu.memory_space<vmem>>, vector<1x32xf32>
    %cst_100 = arith.constant dense<0.000000e+00> : vector<8xf32>
    %177 = vector.multi_reduction <add>, %174, %cst_100 [1] : vector<8x32xf32> to vector<8xf32>
    %178 = vector.shape_cast %177 : vector<8xf32> to vector<8x1xf32>
    %cst_101 = arith.constant 3.200000e+01 : f32
    %179 = vector.broadcast %cst_101 : f32 to vector<8x1xf32>
    %180 = arith.divf %178, %179 : vector<8x1xf32>
    %181 = vector.broadcast %180 : vector<8x1xf32> to vector<8x32xf32>
    %182 = arith.subf %174, %181 : vector<8x32xf32>
    %183 = arith.mulf %182, %182 : vector<8x32xf32>
    %cst_102 = arith.constant dense<0.000000e+00> : vector<8xf32>
    %184 = vector.multi_reduction <add>, %183, %cst_102 [1] : vector<8x32xf32> to vector<8xf32>
    %185 = vector.shape_cast %184 : vector<8xf32> to vector<8x1xf32>
    %cst_103 = arith.constant 3.200000e+01 : f32
    %186 = vector.broadcast %cst_103 : f32 to vector<8x1xf32>
    %187 = arith.divf %185, %186 : vector<8x1xf32>
    %188 = vector.broadcast %180 : vector<8x1xf32> to vector<8x32xf32>
    %189 = arith.subf %174, %188 : vector<8x32xf32>
    %cst_104 = arith.constant 9.99999997E-7 : f32
    %190 = vector.broadcast %cst_104 : f32 to vector<8x1xf32>
    %191 = arith.addf %187, %190 : vector<8x1xf32>
    %192 = math.rsqrt %191 : vector<8x1xf32>
    %193 = vector.broadcast %192 : vector<8x1xf32> to vector<8x32xf32>
    %194 = arith.mulf %189, %193 : vector<8x32xf32>
    %195 = vector.broadcast %175 : vector<1x32xf32> to vector<8x32xf32>
    %196 = arith.mulf %194, %195 : vector<8x32xf32>
    %197 = vector.broadcast %176 : vector<1x32xf32> to vector<8x32xf32>
    %198 = arith.addf %196, %197 : vector<8x32xf32>
    %199 = vector.shape_cast %198 : vector<8x32xf32> to vector<1x8x32xf32>
    %c0_105 = arith.constant 0 : index
    %c0_106 = arith.constant 0 : index
    %c0_107 = arith.constant 0 : index
    %200 = vector.load %arg13[%c0_105, %c0_106, %c0_107] : memref<1x8x32xf32, #tpu.memory_space<vmem>>, vector<1x8x32xf32>
    tpu.vector_store %arg13[%c0_105, %c0_106, %c0_107], %199 {strides = array<i32>} : memref<1x8x32xf32, #tpu.memory_space<vmem>>, vector<1x8x32xf32>,
    return
  }
  func.func @transform_0(%arg0: i32) -> (i32, i32, i32) {
    %c0_i32 = arith.constant 0 : i32
    %c0_i32_0 = arith.constant 0 : i32
    %c0_i32_1 = arith.constant 0 : i32
    return %arg0, %c0_i32, %c0_i32_0 : i32, i32, i32
  }
  func.func @transform_1(%arg0: i32) -> (i32, i32) {
    %c0_i32 = arith.constant 0 : i32
    %c0_i32_0 = arith.constant 0 : i32
    %c0_i32_1 = arith.constant 0 : i32
    return %c0_i32, %c0_i32_0 : i32, i32
  }
  func.func @transform_2(%arg0: i32) -> (i32, i32) {
    %c0_i32 = arith.constant 0 : i32
    %c0_i32_0 = arith.constant 0 : i32
    %c0_i32_1 = arith.constant 0 : i32
    return %c0_i32, %c0_i32_0 : i32, i32
  }
  func.func @transform_3(%arg0: i32) -> (i32, i32) {
    %c0_i32 = arith.constant 0 : i32
    %c0_i32_0 = arith.constant 0 : i32
    %c0_i32_1 = arith.constant 0 : i32
    return %c0_i32, %c0_i32_0 : i32, i32
  }
  func.func @transform_4(%arg0: i32) -> (i32, i32) {
    %c0_i32 = arith.constant 0 : i32
    %c0_i32_0 = arith.constant 0 : i32
    %c0_i32_1 = arith.constant 0 : i32
    return %c0_i32, %c0_i32_0 : i32, i32
  }
  func.func @transform_5(%arg0: i32) -> (i32, i32) {
    %c0_i32 = arith.constant 0 : i32
    %c0_i32_0 = arith.constant 0 : i32
    %c0_i32_1 = arith.constant 0 : i32
    return %c0_i32, %c0_i32_0 : i32, i32
  }
  func.func @transform_6(%arg0: i32) -> (i32, i32, i32) {
    %c0_i32 = arith.constant 0 : i32
    %c0_i32_0 = arith.constant 0 : i32
    %c0_i32_1 = arith.constant 0 : i32
    %c0_i32_2 = arith.constant 0 : i32
    return %c0_i32, %c0_i32_0, %c0_i32_1 : i32, i32, i32
  }
  func.func @transform_7(%arg0: i32) -> (i32, i32, i32) {
    %c0_i32 = arith.constant 0 : i32
    %c0_i32_0 = arith.constant 0 : i32
    %c0_i32_1 = arith.constant 0 : i32
    %c0_i32_2 = arith.constant 0 : i32
    return %c0_i32, %c0_i32_0, %c0_i32_1 : i32, i32, i32
  }
  func.func @transform_8(%arg0: i32) -> (i32, i32, i32) {
    %c0_i32 = arith.constant 0 : i32
    %c0_i32_0 = arith.constant 0 : i32
    %c0_i32_1 = arith.constant 0 : i32
    %c0_i32_2 = arith.constant 0 : i32
    return %c0_i32, %c0_i32_0, %c0_i32_1 : i32, i32, i32
  }
  func.func @transform_9(%arg0: i32) -> (i32, i32, i32) {
    %c0_i32 = arith.constant 0 : i32
    %c0_i32_0 = arith.constant 0 : i32
    %c0_i32_1 = arith.constant 0 : i32
    %c0_i32_2 = arith.constant 0 : i32
    return %c0_i32, %c0_i32_0, %c0_i32_1 : i32, i32, i32
  }
  func.func @transform_10(%arg0: i32) -> (i32, i32) {
    %c0_i32 = arith.constant 0 : i32
    %c0_i32_0 = arith.constant 0 : i32
    %c0_i32_1 = arith.constant 0 : i32
    return %c0_i32, %c0_i32_0 : i32, i32
  }
  func.func @transform_11(%arg0: i32) -> (i32, i32) {
    %c0_i32 = arith.constant 0 : i32
    %c0_i32_0 = arith.constant 0 : i32
    %c0_i32_1 = arith.constant 0 : i32
    return %c0_i32, %c0_i32_0 : i32, i32
  }
  func.func @transform_12(%arg0: i32) -> (i32, i32, i32) {
    %c0_i32 = arith.constant 0 : i32
    %c0_i32_0 = arith.constant 0 : i32
    %c0_i32_1 = arith.constant 0 : i32
    return %arg0, %c0_i32, %c0_i32_0 : i32, i32, i32
  }
}

</mosaic_0001>

<llo_original>
// kernel: tpu_custom_call.1
$region0: #{tpu_custom_call.1}
  #allocation0 [shape = 'u32[]', space=smem, size = 0x4, offset = 0x4, fixed_abs, tag = 'smem constant byte address 0x4 - core index']
  #allocation1 [shape = 'u32[144,128]{1,0:T(1,128)}', space=vmem, size = 0x12000, scoped, tag = 'internal scratch']
  %s0 = inlined_call_operand.hbm [shape: f32[2,8,16], index: 0, kind: input, shape index: {}]
  %s1 = inlined_call_operand.hbm [shape: bf16[16,32], index: 1, kind: input, shape index: {}]
  %s2 = inlined_call_operand.vmem [shape: f32[1,32], index: 2, kind: input, shape index: {}]
  %s3 = inlined_call_operand.hbm [shape: f32[8,32], index: 3, kind: input, shape index: {}]
  %s4 = inlined_call_operand.vmem [shape: f32[1,32], index: 4, kind: input, shape index: {}]
  %s5 = inlined_call_operand.vmem [shape: f32[1,32], index: 5, kind: input, shape index: {}]
  %s6 = inlined_call_operand.hbm [shape: bf16[4,32,32], index: 6, kind: input, shape index: {}]
  %s7 = inlined_call_operand.hbm [shape: bf16[4,32,32], index: 7, kind: input, shape index: {}]
  %s8 = inlined_call_operand.hbm [shape: bf16[4,32,32], index: 8, kind: input, shape index: {}]
  %s9 = inlined_call_operand.hbm [shape: bf16[4,32,32], index: 9, kind: input, shape index: {}]
  %s10 = inlined_call_operand.vmem [shape: f32[1,32], index: 10, kind: input, shape index: {}]
  %s11 = inlined_call_operand.vmem [shape: f32[1,32], index: 11, kind: input, shape index: {}]
  %s12 = inlined_call_operand.hbm [shape: f32[2,8,32], index: 12, kind: output, shape index: {}]
  %s13 = sld [smem:[#allocation0]]
  $region109: #{tpu_custom_call.1} parent=0
    _
  %s15 = ssub.s32 1, %s13
  %s16 = scalar_select 0, %s15, %s13
  $region1: #{tpu_custom_call.1} parent=0
    #allocation2 [shape = 'u8[8192]{0}', space=vmem, size = 0x2000, scoped, tag = 'input window, operand 0']
    #allocation3 [shape = 's32[2]{0}', space=sflag, size = 0x8, scoped, tag = 'scoped memory for tpu_custom_call.1']
    #allocation4 [shape = 's32[2]{0}', space=sflag, size = 0x8, scoped, tag = 'scoped memory for tpu_custom_call.1']
    #allocation5 [shape = 'u8[4096]{0}', space=vmem, size = 0x1000, scoped, tag = 'input window, operand 1, single buffered']
    #allocation6 [shape = 's32[1]{0}', space=sflag, size = 0x4, scoped, tag = 'scoped memory for tpu_custom_call.1']
    #allocation7 [shape = 'u8[4096]{0}', space=vmem, size = 0x1000, scoped, tag = 'input window, operand 3, single buffered']
    #allocation8 [shape = 'u8[32768]{0}', space=vmem, size = 0x8000, scoped, tag = 'input window, operand 6, single buffered']
    #allocation9 [shape = 's32[1]{0}', space=sflag, size = 0x4, scoped, tag = 'scoped memory for tpu_custom_call.1']
    #allocation10 [shape = 'u8[32768]{0}', space=vmem, size = 0x8000, scoped, tag = 'input window, operand 7, single buffered']
    #allocation11 [shape = 'u8[32768]{0}', space=vmem, size = 0x8000, scoped, tag = 'input window, operand 8, single buffered']
    #allocation12 [shape = 's32[1]{0}', space=sflag, size = 0x4, scoped, tag = 'scoped memory for tpu_custom_call.1']
    #allocation13 [shape = 'u8[32768]{0}', space=vmem, size = 0x8000, scoped, tag = 'input window, operand 9, single buffered']
    #allocation14 [shape = 'u8[8192]{0}', space=vmem, size = 0x2000, scoped, tag = 'output window, operand 0']
    %17 = vsyncpa [#allocation3], 0
    %s18 = scalar_lea.sflag [#allocation3], 1
    %19 = vsyncpa %s18, 0
    %20 = vsyncpa [#allocation6], 0
    %21 = vsyncpa [#allocation9], 0
    %22 = vsyncpa [#allocation12], 0
    %23 = vsyncpa [#allocation4], 0
    %s24 = scalar_lea.sflag [#allocation4], 1
    %25 = vsyncpa %s24, 0
    loop: start=0, step=1, limit=4
    $region2: #{tpu_custom_call.1} parent=1 // loop_pre_header
      _
    $region3: #{tpu_custom_call.1} parent=1 // loop_header
      %s27 = sphi 0, %s31
      %p28 = scmp.ge.s32.totalorder %s27, 4
      %s37 = sphi 0, %s39
      %s40 = sphi 0, %s37
      %s41 = sphi 0, %s40
      %s57 = sphi 0, %s41
      %s61 = sphi 0, %s61
      %s63 = sphi 0, %s61
      %s64 = sphi 0, %s63
      %s78 = sphi 0, %s64
      %s82 = sphi 0, %s82
      %s84 = sphi 0, %s82
      %s85 = sphi 0, %s84
      %s99 = sphi 0, %s85
      %s103 = sphi 0, %s103
      %s105 = sphi 0, %s103
      %s106 = sphi 0, %s105
      %s120 = sphi 0, %s106
      %s124 = sphi 0, %s124
      %s126 = sphi 0, %s124
      %s127 = sphi 0, %s126
      %s141 = sphi 0, %s127
      %s145 = sphi 0, %s145
      %s147 = sphi 0, %s145
      %s148 = sphi 0, %s147
      %s162 = sphi 0, %s148
      %s166 = sphi 0, %s166
      %s168 = sphi 0, %s166
      %s169 = sphi 0, %s168
      %s183 = sphi 0, %s169
      %s187 = sphi 0, %s187
      %s189 = sphi 0, %s187
      %s190 = sphi 0, %s189
      %s204 = sphi 0, %s190
      %s208 = sphi 0, %s208
      %s210 = sphi 0, %s208
      %s211 = sphi 0, %s210
      %s225 = sphi 0, %s211
      %s229 = sphi 0, %s229
      %s231 = sphi 0, %s229
      %s232 = sphi 0, %s231
      %s246 = sphi 0, %s232
      %s250 = sphi 0, %s250
      %s252 = sphi 0, %s250
      %s253 = sphi 0, %s252
      %s267 = sphi 0, %s253
      %s271 = sphi 0, %s271
      %s273 = sphi 0, %s271
      %s274 = sphi 0, %s273
      %s288 = sphi 0, %s274
      %s294 = sphi 0, %s296
      %s297 = sphi 0, %s294
      %s298 = sphi 0, %s297
      %s314 = sphi 0, %s298
    $region4: #{tpu_custom_call.1} parent=1 // loop_header_branch
      %30 = sbr.rel (%p28) target = $region8
    $region5: #{tpu_custom_call.1} parent=1 // loop_body
      %s32 = ssub.s32 %s27, 1
      %s33 = ssub.s32 %s27, 2
      %s34 = sadd.s32 %s27, 1
      %s35 = ssub.s32 %s27, %s34
      %p36 = scmp.eq.s32.totalorder %s35, 0
      %s38 = sadd.s32 %s37, 1
      %s39 = scalar_select %p36, %s37, %s38
      %p42 = pneg %p36
      %p43 = scmp.eq.s32.totalorder %s27, 1
      %p44 = por %p42, %p43
      %p45 = scmp.ne.s32.totalorder %s37, %s40
      %p46 = scmp.eq.s32.totalorder %s27, 0
      %p47 = por %p45, %p46
      %p48 = scmp.ne.s32.totalorder %s37, %s40
      %p49 = scmp.eq.s32.totalorder %s32, 1
      %p50 = por %p48, %p49
      %p51 = scmp.ne.s32.totalorder %s40, %s41
      %p52 = scmp.eq.s32.totalorder %s32, 0
      %p53 = por %p51, %p52
      %p54 = scmp.ne.s32.totalorder %s40, %s41
      %p55 = scmp.eq.s32.totalorder %s33, 1
      %p56 = por %p54, %p55
      %p58 = scmp.ne.s32.totalorder %s41, %s57
      %p59 = scmp.eq.s32.totalorder %s33, 0
      %p60 = por %p58, %p59
      %s62 = sadd.s32 %s61, 1
      %p65 = scmp.eq.s32.totalorder %s27, 1
      %p66 = scmp.ne.s32.totalorder %s61, %s63
      %p67 = scmp.eq.s32.totalorder %s27, 0
      %p68 = por %p66, %p67
      %p69 = scmp.ne.s32.totalorder %s61, %s63
      %p70 = scmp.eq.s32.totalorder %s32, 1
      %p71 = por %p69, %p70
      %p72 = scmp.ne.s32.totalorder %s63, %s64
      %p73 = scmp.eq.s32.totalorder %s32, 0
      %p74 = por %p72, %p73
      %p75 = scmp.ne.s32.totalorder %s63, %s64
      %p76 = scmp.eq.s32.totalorder %s33, 1
      %p77 = por %p75, %p76
      %p79 = scmp.ne.s32.totalorder %s64, %s78
      %p80 = scmp.eq.s32.totalorder %s33, 0
      %p81 = por %p79, %p80
      %s83 = sadd.s32 %s82, 1
      %p86 = scmp.eq.s32.totalorder %s27, 1
      %p87 = scmp.ne.s32.totalorder %s82, %s84
      %p88 = scmp.eq.s32.totalorder %s27, 0
      %p89 = por %p87, %p88
      %p90 = scmp.ne.s32.totalorder %s82, %s84
      %p91 = scmp.eq.s32.totalorder %s32, 1
      %p92 = por %p90, %p91
      %p93 = scmp.ne.s32.totalorder %s84, %s85
      %p94 = scmp.eq.s32.totalorder %s32, 0
      %p95 = por %p93, %p94
      %p96 = scmp.ne.s32.totalorder %s84, %s85
      %p97 = scmp.eq.s32.totalorder %s33, 1
      %p98 = por %p96, %p97
      %p100 = scmp.ne.s32.totalorder %s85, %s99
      %p101 = scmp.eq.s32.totalorder %s33, 0
      %p102 = por %p100, %p101
      %s104 = sadd.s32 %s103, 1
      %p107 = scmp.eq.s32.totalorder %s27, 1
      %p108 = scmp.ne.s32.totalorder %s103, %s105
      %p109 = scmp.eq.s32.totalorder %s27, 0
      %p110 = por %p108, %p109
      %p111 = scmp.ne.s32.totalorder %s103, %s105
      %p112 = scmp.eq.s32.totalorder %s32, 1
      %p113 = por %p111, %p112
      %p114 = scmp.ne.s32.totalorder %s105, %s106
      %p115 = scmp.eq.s32.totalorder %s32, 0
      %p116 = por %p114, %p115
      %p117 = scmp.ne.s32.totalorder %s105, %s106
      %p118 = scmp.eq.s32.totalorder %s33, 1
      %p119 = por %p117, %p118
      %p121 = scmp.ne.s32.totalorder %s106, %s120
      %p122 = scmp.eq.s32.totalorder %s33, 0
      %p123 = por %p121, %p122
      %s125 = sadd.s32 %s124, 1
      %p128 = scmp.eq.s32.totalorder %s27, 1
      %p129 = scmp.ne.s32.totalorder %s124, %s126
      %p130 = scmp.eq.s32.totalorder %s27, 0
      %p131 = por %p129, %p130
      %p132 = scmp.ne.s32.totalorder %s124, %s126
      %p133 = scmp.eq.s32.totalorder %s32, 1
      %p134 = por %p132, %p133
      %p135 = scmp.ne.s32.totalorder %s126, %s127
      %p136 = scmp.eq.s32.totalorder %s32, 0
      %p137 = por %p135, %p136
      %p138 = scmp.ne.s32.totalorder %s126, %s127
      %p139 = scmp.eq.s32.totalorder %s33, 1
      %p140 = por %p138, %p139
      %p142 = scmp.ne.s32.totalorder %s127, %s141
      %p143 = scmp.eq.s32.totalorder %s33, 0
      %p144 = por %p142, %p143
      %s146 = sadd.s32 %s145, 1
      %p149 = scmp.eq.s32.totalorder %s27, 1
      %p150 = scmp.ne.s32.totalorder %s145, %s147
      %p151 = scmp.eq.s32.totalorder %s27, 0
      %p152 = por %p150, %p151
      %p153 = scmp.ne.s32.totalorder %s145, %s147
      %p154 = scmp.eq.s32.totalorder %s32, 1
      %p155 = por %p153, %p154
      %p156 = scmp.ne.s32.totalorder %s147, %s148
      %p157 = scmp.eq.s32.totalorder %s32, 0
      %p158 = por %p156, %p157
      %p159 = scmp.ne.s32.totalorder %s147, %s148
      %p160 = scmp.eq.s32.totalorder %s33, 1
      %p161 = por %p159, %p160
      %p163 = scmp.ne.s32.totalorder %s148, %s162
      %p164 = scmp.eq.s32.totalorder %s33, 0
      %p165 = por %p163, %p164
      %s167 = sadd.s32 %s166, 1
      %p170 = scmp.eq.s32.totalorder %s27, 1
      %p171 = scmp.ne.s32.totalorder %s166, %s168
      %p172 = scmp.eq.s32.totalorder %s27, 0
      %p173 = por %p171, %p172
      %p174 = scmp.ne.s32.totalorder %s166, %s168
      %p175 = scmp.eq.s32.totalorder %s32, 1
      %p176 = por %p174, %p175
      %p177 = scmp.ne.s32.totalorder %s168, %s169
      %p178 = scmp.eq.s32.totalorder %s32, 0
      %p179 = por %p177, %p178
      %p180 = scmp.ne.s32.totalorder %s168, %s169
      %p181 = scmp.eq.s32.totalorder %s33, 1
      %p182 = por %p180, %p181
      %p184 = scmp.ne.s32.totalorder %s169, %s183
      %p185 = scmp.eq.s32.totalorder %s33, 0
      %p186 = por %p184, %p185
      %s188 = sadd.s32 %s187, 1
      %p191 = scmp.eq.s32.totalorder %s27, 1
      %p192 = scmp.ne.s32.totalorder %s187, %s189
      %p193 = scmp.eq.s32.totalorder %s27, 0
      %p194 = por %p192, %p193
      %p195 = scmp.ne.s32.totalorder %s187, %s189
      %p196 = scmp.eq.s32.totalorder %s32, 1
      %p197 = por %p195, %p196
      %p198 = scmp.ne.s32.totalorder %s189, %s190
      %p199 = scmp.eq.s32.totalorder %s32, 0
      %p200 = por %p198, %p199
      %p201 = scmp.ne.s32.totalorder %s189, %s190
      %p202 = scmp.eq.s32.totalorder %s33, 1
      %p203 = por %p201, %p202
      %p205 = scmp.ne.s32.totalorder %s190, %s204
      %p206 = scmp.eq.s32.totalorder %s33, 0
      %p207 = por %p205, %p206
      %s209 = sadd.s32 %s208, 1
      %p212 = scmp.eq.s32.totalorder %s27, 1
      %p213 = scmp.ne.s32.totalorder %s208, %s210
      %p214 = scmp.eq.s32.totalorder %s27, 0
      %p215 = por %p213, %p214
      %p216 = scmp.ne.s32.totalorder %s208, %s210
      %p217 = scmp.eq.s32.totalorder %s32, 1
      %p218 = por %p216, %p217
      %p219 = scmp.ne.s32.totalorder %s210, %s211
      %p220 = scmp.eq.s32.totalorder %s32, 0
      %p221 = por %p219, %p220
      %p222 = scmp.ne.s32.totalorder %s210, %s211
      %p223 = scmp.eq.s32.totalorder %s33, 1
      %p224 = por %p222, %p223
      %p226 = scmp.ne.s32.totalorder %s211, %s225
      %p227 = scmp.eq.s32.totalorder %s33, 0
      %p228 = por %p226, %p227
      %s230 = sadd.s32 %s229, 1
      %p233 = scmp.eq.s32.totalorder %s27, 1
      %p234 = scmp.ne.s32.totalorder %s229, %s231
      %p235 = scmp.eq.s32.totalorder %s27, 0
      %p236 = por %p234, %p235
      %p237 = scmp.ne.s32.totalorder %s229, %s231
      %p238 = scmp.eq.s32.totalorder %s32, 1
      %p239 = por %p237, %p238
      %p240 = scmp.ne.s32.totalorder %s231, %s232
      %p241 = scmp.eq.s32.totalorder %s32, 0
      %p242 = por %p240, %p241
      %p243 = scmp.ne.s32.totalorder %s231, %s232
      %p244 = scmp.eq.s32.totalorder %s33, 1
      %p245 = por %p243, %p244
      %p247 = scmp.ne.s32.totalorder %s232, %s246
      %p248 = scmp.eq.s32.totalorder %s33, 0
      %p249 = por %p247, %p248
      %s251 = sadd.s32 %s250, 1
      %p254 = scmp.eq.s32.totalorder %s27, 1
      %p255 = scmp.ne.s32.totalorder %s250, %s252
      %p256 = scmp.eq.s32.totalorder %s27, 0
      %p257 = por %p255, %p256
      %p258 = scmp.ne.s32.totalorder %s250, %s252
      %p259 = scmp.eq.s32.totalorder %s32, 1
      %p260 = por %p258, %p259
      %p261 = scmp.ne.s32.totalorder %s252, %s253
      %p262 = scmp.eq.s32.totalorder %s32, 0
      %p263 = por %p261, %p262
      %p264 = scmp.ne.s32.totalorder %s252, %s253
      %p265 = scmp.eq.s32.totalorder %s33, 1
      %p266 = por %p264, %p265
      %p268 = scmp.ne.s32.totalorder %s253, %s267
      %p269 = scmp.eq.s32.totalorder %s33, 0
      %p270 = por %p268, %p269
      %s272 = sadd.s32 %s271, 1
      %p275 = scmp.eq.s32.totalorder %s27, 1
      %p276 = scmp.ne.s32.totalorder %s271, %s273
      %p277 = scmp.eq.s32.totalorder %s27, 0
      %p278 = por %p276, %p277
      %p279 = scmp.ne.s32.totalorder %s271, %s273
      %p280 = scmp.eq.s32.totalorder %s32, 1
      %p281 = por %p279, %p280
      %p282 = scmp.ne.s32.totalorder %s273, %s274
      %p283 = scmp.eq.s32.totalorder %s32, 0
      %p284 = por %p282, %p283
      %p285 = scmp.ne.s32.totalorder %s273, %s274
      %p286 = scmp.eq.s32.totalorder %s33, 1
      %p287 = por %p285, %p286
      %p289 = scmp.ne.s32.totalorder %s274, %s288
      %p290 = scmp.eq.s32.totalorder %s33, 0
      %p291 = por %p289, %p290
      %s292 = ssub.s32 %s27, %s34
      %p293 = scmp.eq.s32.totalorder %s292, 0
      %s295 = sadd.s32 %s294, 1
      %s296 = scalar_select %p293, %s294, %s295
      %p299 = pneg %p293
      %p300 = scmp.eq.s32.totalorder %s27, 1
      %p301 = por %p299, %p300
      %p302 = scmp.ne.s32.totalorder %s294, %s297
      %p303 = scmp.eq.s32.totalorder %s27, 0
      %p304 = por %p302, %p303
      %p305 = scmp.ne.s32.totalorder %s294, %s297
      %p306 = scmp.eq.s32.totalorder %s32, 1
      %p307 = por %p305, %p306
      %p308 = scmp.ne.s32.totalorder %s297, %s298
      %p309 = scmp.eq.s32.totalorder %s32, 0
      %p310 = por %p308, %p309
      %p311 = scmp.ne.s32.totalorder %s297, %s298
      %p312 = scmp.eq.s32.totalorder %s33, 1
      %p313 = por %p311, %p312
      %p315 = scmp.ne.s32.totalorder %s298, %s314
      %p316 = scmp.eq.s32.totalorder %s33, 0
      %p317 = por %p315, %p316
      %p318 = scmp.le.s32.totalorder 1, %s27
      %p319 = scmp.lt.s32.totalorder %s27, 3
      %p320 = pnand %p318, %p319
      %p321 = pneg %p320
      // Predicated region
      $region9: #{tpu_custom_call.1} parent=5 // pred_check
        _
      $region10: #{tpu_custom_call.1} parent=5 // pred_check_branch
        %323 = sbr.rel (%p320) target = $region12
      $region11: #{tpu_custom_call.1} parent=5 // pred_region
        %s324 = ssub.s32 %s27, 1
        // Predicated region
        $region13: #{tpu_custom_call.1} parent=11 // pred_check
          %p325 = pneg %p74
        $region14: #{tpu_custom_call.1} parent=11 // pred_check_branch
          %327 = sbr.rel (%p325) target = $region16
        $region15: #{tpu_custom_call.1} parent=11 // pred_region
          %s329 = ssub.s32 128, 128
          %330 = vsyncadd [#allocation6], %s329
          %s331 = sshll.u32 [#allocation5], 4
          %s332 = int_to_ptr.vmem [resolvable:$true] %s331
          %337 = dma.hbm_to_vmem [thread:$0]  %s1, 128, %s332, [#allocation6], 64, 64, 4
        $region16: #{tpu_custom_call.1} parent=11 // pred_fallthru
          _
        // Predicated region
        $region17: #{tpu_custom_call.1} parent=11 // pred_check
          %p338 = pneg %p95
        $region18: #{tpu_custom_call.1} parent=11 // pred_check_branch
          %340 = sbr.rel (%p338) target = $region20
        $region19: #{tpu_custom_call.1} parent=11 // pred_region
          _
        $region20: #{tpu_custom_call.1} parent=11 // pred_fallthru
          _
        // Predicated region
        $region21: #{tpu_custom_call.1} parent=11 // pred_check
          %p341 = pneg %p116
        $region22: #{tpu_custom_call.1} parent=11 // pred_check_branch
          %343 = sbr.rel (%p341) target = $region24
        $region23: #{tpu_custom_call.1} parent=11 // pred_region
          %s345 = ssub.s32 128, 128
          %346 = vsyncadd [#allocation6], %s345
          %s348 = sshll.u32 [#allocation7], 4
          %s349 = int_to_ptr.vmem [resolvable:$true] %s348
          %351 = dma.hbm_to_vmem [thread:$0]  %s3, 128, %s349, [#allocation6]
        $region24: #{tpu_custom_call.1} parent=11 // pred_fallthru
          _
        // Predicated region
        $region25: #{tpu_custom_call.1} parent=11 // pred_check
          %p352 = pneg %p137
        $region26: #{tpu_custom_call.1} parent=11 // pred_check_branch
          %354 = sbr.rel (%p352) target = $region28
        $region27: #{tpu_custom_call.1} parent=11 // pred_region
          _
        $region28: #{tpu_custom_call.1} parent=11 // pred_fallthru
          _
        // Predicated region
        $region29: #{tpu_custom_call.1} parent=11 // pred_check
          %p355 = pneg %p158
        $region30: #{tpu_custom_call.1} parent=11 // pred_check_branch
          %357 = sbr.rel (%p355) target = $region32
        $region31: #{tpu_custom_call.1} parent=11 // pred_region
          _
        $region32: #{tpu_custom_call.1} parent=11 // pred_fallthru
          _
        // Predicated region
        $region33: #{tpu_custom_call.1} parent=11 // pred_check
          %p358 = pneg %p179
        $region34: #{tpu_custom_call.1} parent=11 // pred_check_branch
          %360 = sbr.rel (%p358) target = $region36
        $region35: #{tpu_custom_call.1} parent=11 // pred_region
          %s362 = ssub.s32 1024, 1024
          %363 = vsyncadd [#allocation9], %s362
          %s364 = sshll.u32 [#allocation8], 4
          %s365 = int_to_ptr.vmem [resolvable:$true] %s364
          %370 = dma.hbm_to_vmem [thread:$0]  %s6, 1024, %s365, [#allocation9], 64, 64, 4
        $region36: #{tpu_custom_call.1} parent=11 // pred_fallthru
          _
        // Predicated region
        $region37: #{tpu_custom_call.1} parent=11 // pred_check
          %p371 = pneg %p200
        $region38: #{tpu_custom_call.1} parent=11 // pred_check_branch
          %373 = sbr.rel (%p371) target = $region40
        $region39: #{tpu_custom_call.1} parent=11 // pred_region
          %s375 = ssub.s32 1024, 1024
          %376 = vsyncadd [#allocation9], %s375
          %s377 = sshll.u32 [#allocation10], 4
          %s378 = int_to_ptr.vmem [resolvable:$true] %s377
          %383 = dma.hbm_to_vmem [thread:$0]  %s7, 1024, %s378, [#allocation9], 64, 64, 4
        $region40: #{tpu_custom_call.1} parent=11 // pred_fallthru
          _
        // Predicated region
        $region41: #{tpu_custom_call.1} parent=11 // pred_check
          %p384 = pneg %p221
        $region42: #{tpu_custom_call.1} parent=11 // pred_check_branch
          %386 = sbr.rel (%p384) target = $region44
        $region43: #{tpu_custom_call.1} parent=11 // pred_region
          %s388 = ssub.s32 1024, 1024
          %389 = vsyncadd [#allocation12], %s388
          %s390 = sshll.u32 [#allocation11], 4
          %s391 = int_to_ptr.vmem [resolvable:$true] %s390
          %396 = dma.hbm_to_vmem [thread:$0]  %s8, 1024, %s391, [#allocation12], 64, 64, 4
        $region44: #{tpu_custom_call.1} parent=11 // pred_fallthru
          _
        // Predicated region
        $region45: #{tpu_custom_call.1} parent=11 // pred_check
          %p397 = pneg %p242
        $region46: #{tpu_custom_call.1} parent=11 // pred_check_branch
          %399 = sbr.rel (%p397) target = $region48
        $region47: #{tpu_custom_call.1} parent=11 // pred_region
          %s401 = ssub.s32 1024, 1024
          %402 = vsyncadd [#allocation12], %s401
          %s403 = sshll.u32 [#allocation13], 4
          %s404 = int_to_ptr.vmem [resolvable:$true] %s403
          %409 = dma.hbm_to_vmem [thread:$0]  %s9, 1024, %s404, [#allocation12], 64, 64, 4
        $region48: #{tpu_custom_call.1} parent=11 // pred_fallthru
          _
        // Predicated region
        $region49: #{tpu_custom_call.1} parent=11 // pred_check
          %p410 = pneg %p263
        $region50: #{tpu_custom_call.1} parent=11 // pred_check_branch
          %412 = sbr.rel (%p410) target = $region52
        $region51: #{tpu_custom_call.1} parent=11 // pred_region
          _
        $region52: #{tpu_custom_call.1} parent=11 // pred_fallthru
          _
        // Predicated region
        $region53: #{tpu_custom_call.1} parent=11 // pred_check
          %p413 = pneg %p284
        $region54: #{tpu_custom_call.1} parent=11 // pred_check_branch
          %415 = sbr.rel (%p413) target = $region56
        $region55: #{tpu_custom_call.1} parent=11 // pred_region
          _
        $region56: #{tpu_custom_call.1} parent=11 // pred_fallthru
          _
      $region12: #{tpu_custom_call.1} parent=5 // pred_fallthru
        _
      %p416 = scmp.lt.s32.totalorder %s27, 2
      // Predicated region
      $region57: #{tpu_custom_call.1} parent=5 // pred_check
        %p417 = pneg %p416
      $region58: #{tpu_custom_call.1} parent=5 // pred_check_branch
        %419 = sbr.rel (%p417) target = $region60
      $region59: #{tpu_custom_call.1} parent=5 // pred_region
        // Predicated region
        $region61: #{tpu_custom_call.1} parent=59 // pred_check
          %p420 = pneg %p47
        $region62: #{tpu_custom_call.1} parent=59 // pred_check_branch
          %422 = sbr.rel (%p420) target = $region64
        $region63: #{tpu_custom_call.1} parent=59 // pred_region
          %s423 = sand.u32 %s37, 1
          %s424 = scalar_lea.sflag [#allocation3], %s423
          %s425 = sand.u32 %s37, 1
          %s426 = smul.addr %s425, 8
          %s427 = scalar_lea.vmem [#allocation2], %s426
          %s429 = ssub.s32 128, 128
          %430 = vsyncadd %s424, %s429
          %s431 = smul.addr %s27, 128
          %s432 = scalar_lea.hbm %s0, %s431
          %s434 = sshll.u32 %s427, 4
          %s435 = int_to_ptr.vmem [resolvable:$true] %s434
          %437 = dma.hbm_to_vmem [thread:$0]  %s432, 128, %s435, %s424
        $region64: #{tpu_custom_call.1} parent=59 // pred_fallthru
          _
      $region60: #{tpu_custom_call.1} parent=5 // pred_fallthru
        _
      %p438 = scmp.le.s32.totalorder 1, %s27
      %p439 = scmp.lt.s32.totalorder %s27, 3
      %p440 = pnand %p438, %p439
      %p441 = pneg %p440
      // Predicated region
      $region65: #{tpu_custom_call.1} parent=5 // pred_check
        _
      $region66: #{tpu_custom_call.1} parent=5 // pred_check_branch
        %443 = sbr.rel (%p440) target = $region68
      $region67: #{tpu_custom_call.1} parent=5 // pred_region
        %s444 = ssub.s32 %s27, 1
        %s445 = sand.u32 %s40, 1
        %s446 = scalar_lea.sflag [#allocation3], %s445
        %s447 = sand.u32 %s40, 1
        %s448 = smul.addr %s447, 8
        %s449 = scalar_lea.vmem [#allocation2], %s448
        // Predicated region
        $region69: #{tpu_custom_call.1} parent=67 // pred_check
          %p450 = pneg %p53
        $region70: #{tpu_custom_call.1} parent=67 // pred_check_branch
          %452 = sbr.rel (%p450) target = $region72
        $region71: #{tpu_custom_call.1} parent=67 // pred_region
          %453 = dma.done %s446, 128
        $region72: #{tpu_custom_call.1} parent=67 // pred_fallthru
          _
        // Predicated region
        $region73: #{tpu_custom_call.1} parent=67 // pred_check
          %p454 = pneg %p74
        $region74: #{tpu_custom_call.1} parent=67 // pred_check_branch
          %456 = sbr.rel (%p454) target = $region76
        $region75: #{tpu_custom_call.1} parent=67 // pred_region
          %457 = dma.done [#allocation6], 128
        $region76: #{tpu_custom_call.1} parent=67 // pred_fallthru
          _
        // Predicated region
        $region77: #{tpu_custom_call.1} parent=67 // pred_check
          %p458 = pneg %p116
        $region78: #{tpu_custom_call.1} parent=67 // pred_check_branch
          %460 = sbr.rel (%p458) target = $region80
        $region79: #{tpu_custom_call.1} parent=67 // pred_region
          %461 = dma.done [#allocation6], 128
        $region80: #{tpu_custom_call.1} parent=67 // pred_fallthru
          _
        // Predicated region
        $region81: #{tpu_custom_call.1} parent=67 // pred_check
          %p462 = pneg %p179
        $region82: #{tpu_custom_call.1} parent=67 // pred_check_branch
          %464 = sbr.rel (%p462) target = $region84
        $region83: #{tpu_custom_call.1} parent=67 // pred_region
          %465 = dma.done [#allocation9], 1024
        $region84: #{tpu_custom_call.1} parent=67 // pred_fallthru
          _
        // Predicated region
        $region85: #{tpu_custom_call.1} parent=67 // pred_check
          %p466 = pneg %p200
        $region86: #{tpu_custom_call.1} parent=67 // pred_check_branch
          %468 = sbr.rel (%p466) target = $region88
        $region87: #{tpu_custom_call.1} parent=67 // pred_region
          %469 = dma.done [#allocation9], 1024
        $region88: #{tpu_custom_call.1} parent=67 // pred_fallthru
          _
        // Predicated region
        $region89: #{tpu_custom_call.1} parent=67 // pred_check
          %p470 = pneg %p221
        $region90: #{tpu_custom_call.1} parent=67 // pred_check_branch
          %472 = sbr.rel (%p470) target = $region92
        $region91: #{tpu_custom_call.1} parent=67 // pred_region
          %473 = dma.done [#allocation12], 1024
        $region92: #{tpu_custom_call.1} parent=67 // pred_fallthru
          _
        // Predicated region
        $region93: #{tpu_custom_call.1} parent=67 // pred_check
          %p474 = pneg %p242
        $region94: #{tpu_custom_call.1} parent=67 // pred_check_branch
          %476 = sbr.rel (%p474) target = $region96
        $region95: #{tpu_custom_call.1} parent=67 // pred_region
          %477 = dma.done [#allocation12], 1024
        $region96: #{tpu_custom_call.1} parent=67 // pred_fallthru
          _
        %s478 = sand.u32 %s40, 1
        %s479 = scalar_lea.sflag [#allocation3], %s478
        %s480 = sand.u32 %s40, 1
        %s481 = smul.addr %s480, 8
        %s482 = scalar_lea.vmem [#allocation2], %s481
        %p483 = pneg %p53
        %p484 = pneg %p50
        %p485 = pneg %p74
        %p486 = pneg %p71
        %p487 = pneg %p95
        %p488 = pneg %p92
        %p489 = pneg %p116
        %p490 = pneg %p113
        %p491 = pneg %p137
        %p492 = pneg %p134
        %p493 = pneg %p158
        %p494 = pneg %p155
        %p495 = pneg %p179
        %p496 = pneg %p176
        %p497 = pneg %p200
        %p498 = pneg %p197
        %p499 = pneg %p221
        %p500 = pneg %p218
        %p501 = pneg %p242
        %p502 = pneg %p239
        %p503 = pneg %p263
        %p504 = pneg %p260
        %p505 = pneg %p284
        %p506 = pneg %p281
        %p507 = pneg %p310
        %p508 = pneg %p307
        %s509 = sand.u32 %s297, 1
        %s510 = scalar_lea.sflag [#allocation4], %s509
        %s511 = sand.u32 %s297, 1
        %s512 = smul.addr %s511, 8
        %s513 = scalar_lea.vmem [#allocation14], %s512
        %v515 = vld [vmem:[%s449] sm:$0xff]
        %v516 = vpack.c.bf16 %v515, %v515
        %v517 = vld [vmem:[#allocation5] sm:$0xf]
        %v518 = vld [vmem:[#allocation5 + $0x4] sm:$0xf]
        %v519 = vld [vmem:[%s2] sm:$0x1]
        %v521 = vlaneseq
        %v522 = vshrl.u32 %v521, 7
        %v523 = vsub.s32 0, %v522
        %v524 = vrot.slane %v519, %v523
        %v528 = vunpack.c.l.b16 %v517
        %v529 = vunpack.c.l.b16 %v518
        %v530 = vpack.c.b16 %v529, %v528
        %vm532 = vcmask 130048
        %v534 = vsel %vm532, %v516, 0
        %536 = vmatprep.subr.bf16.mxu0 0
        %537 = vmatpush1.bf16.msra.mxu0 0
        %538 = vmatprep.subr.bf16.mxu0 0
        %539 = vmatpush1.bf16.msra.mxu0 0
        %540 = vmatprep.subr.bf16.mxu0 0
        %541 = vmatpush1.bf16.msra.mxu0 0
        %542 = vmatprep.subr.bf16.mxu0 0
        %543 = vmatpush1.bf16.msra.mxu0 0
        %544 = vmatprep.subr.bf16.mxu0 0
        %545 = vmatpush1.bf16.msra.mxu0 0
        %546 = vmatprep.subr.bf16.mxu0 0
        %547 = vmatpush1.bf16.msra.mxu0 0
        %548 = vmatprep.subr.bf16.mxu0 0
        %549 = vmatpush1.bf16.msra.mxu0 0
        %550 = vmatprep.subr.bf16.mxu0 0
        %551 = vmatpush1.bf16.msra.mxu0 %v530
        %552 = vmatprep.subr.bf16.mxu0 0
        %553 = vmatpush2.bf16.msra.mxu0 0
        %554 = vmatprep.subr.bf16.mxu0 0
        %555 = vmatpush2.bf16.msra.mxu0 0
        %556 = vmatprep.subr.bf16.mxu0 0
        %557 = vmatpush2.bf16.msra.mxu0 0
        %558 = vmatprep.subr.bf16.mxu0 0
        %559 = vmatpush2.bf16.msra.mxu0 0
        %560 = vmatprep.subr.bf16.mxu0 0
        %561 = vmatpush2.bf16.msra.mxu0 0
        %562 = vmatprep.subr.bf16.mxu0 0
        %563 = vmatpush2.bf16.msra.mxu0 0
        %564 = vmatprep.subr.bf16.mxu0 0
        %565 = vmatpush2.bf16.msra.mxu0 0
        %566 = vmatprep.subr.bf16.mxu0 0
        %567 = vmatpush2.bf16.msra.mxu0 0
        %568 = vmatprep.mubr.bf16.mxu0 0
        %569 = vmatmul.mubr.bf16.gmra.mxu0 %v534
        %v570 = vpop.f32.mrf.mxu0
        %v571 = vadd.f32 %v524, %v570
        %v572 = vpop.f32.mrf.mxu0
        %v573 = vpop.f32.mrf.mxu0
        %v574 = vpop.f32.mrf.mxu0
        %575 = vdwg.mxu0
        %v576 = vmax.f32 %v571, 0.0
        %v577 = vld [vmem:[#allocation7] sm:$0xff]
        %v578 = vadd.f32 %v576, %v577
        %v579 = vld [vmem:[%s4] sm:$0x1]
        %v580 = vld [vmem:[%s5] sm:$0x1]
        %vm581 = vcmask 261120
        %v582 = vsel %vm581, %v578, 0.0
        %583 = vadd.xlane.f32.xlu0 %v582
        %v584 = vpop.xlane.xlu0 %583
        %v585 = vrcp.pop 32.0
        %v586 = vmul.f32 %v584, %v585
        %v587 = vsub.f32 %v578, %v586
        %v588 = vmul.f32 %v587, %v587
        %v589 = vsel %vm581, %v588, 0.0
        %590 = vadd.xlane.f32.xlu0 %v589
        %v591 = vpop.xlane.xlu0 %590
        %v592 = vmul.f32 %v591, %v585
        %v593 = vadd.f32 %v592, 1e-06
        %v594 = vrsqrt.pop %v593
        %v595 = vmul.f32 %v587, %v594
        %v597 = vlaneseq
        %v598 = vshrl.u32 %v597, 7
        %v599 = vsub.s32 0, %v598
        %v600 = vrot.slane %v579, %v599
        %v602 = vmul.f32 %v595, %v600
        %v604 = vlaneseq
        %v605 = vshrl.u32 %v604, 7
        %v606 = vsub.s32 0, %v605
        %v607 = vrot.slane %v580, %v606
        %v609 = vadd.f32 %v602, %v607
        %v610 = vpack.c.bf16 %v609, %v609
        %v611 = vld [vmem:[#allocation8] sm:$0xf]
        %v612 = vld [vmem:[#allocation8 + $0x4] sm:$0xf]
        %v613 = vld [vmem:[#allocation8 + $0x8] sm:$0xf]
        %v614 = vld [vmem:[#allocation8 + $0xc] sm:$0xf]
        %v619 = vunpack.c.l.b16 %v611
        %v620 = vunpack.c.l.b16 %v612
        %v621 = vunpack.c.l.b16 %v613
        %v622 = vunpack.c.l.b16 %v614
        %v623 = vpack.c.b16 %v620, %v619
        %v624 = vpack.c.b16 %v622, %v621
        %v628 = vsel %vm581, %v610, 0
        %630 = vmatprep.subr.bf16.mxu0 0
        %631 = vmatpush1.bf16.msra.mxu0 0
        %632 = vmatprep.subr.bf16.mxu0 0
        %633 = vmatpush1.bf16.msra.mxu0 0
        %634 = vmatprep.subr.bf16.mxu0 0
        %635 = vmatpush1.bf16.msra.mxu0 0
        %636 = vmatprep.subr.bf16.mxu0 0
        %637 = vmatpush1.bf16.msra.mxu0 0
        %638 = vmatprep.subr.bf16.mxu0 0
        %639 = vmatpush1.bf16.msra.mxu0 0
        %640 = vmatprep.subr.bf16.mxu0 0
        %641 = vmatpush1.bf16.msra.mxu0 0
        %642 = vmatprep.subr.bf16.mxu0 0
        %643 = vmatpush1.bf16.msra.mxu0 %v624
        %644 = vmatprep.subr.bf16.mxu0 0
        %645 = vmatpush1.bf16.msra.mxu0 %v623
        %646 = vmatprep.subr.bf16.mxu0 0
        %647 = vmatpush2.bf16.msra.mxu0 0
        %648 = vmatprep.subr.bf16.mxu0 0
        %649 = vmatpush2.bf16.msra.mxu0 0
        %650 = vmatprep.subr.bf16.mxu0 0
        %651 = vmatpush2.bf16.msra.mxu0 0
        %652 = vmatprep.subr.bf16.mxu0 0
        %653 = vmatpush2.bf16.msra.mxu0 0
        %654 = vmatprep.subr.bf16.mxu0 0
        %655 = vmatpush2.bf16.msra.mxu0 0
        %656 = vmatprep.subr.bf16.mxu0 0
        %657 = vmatpush2.bf16.msra.mxu0 0
        %658 = vmatprep.subr.bf16.mxu0 0
        %659 = vmatpush2.bf16.msra.mxu0 0
        %660 = vmatprep.subr.bf16.mxu0 0
        %661 = vmatpush2.bf16.msra.mxu0 0
        %662 = vmatprep.mubr.bf16.mxu0 0
        %663 = vmatmul.mubr.bf16.gmra.mxu0 %v628
        %v664 = vpop.f32.mrf.mxu0
        %v665 = vadd.f32 0.0, %v664
        %v666 = vpop.f32.mrf.mxu0
        %v667 = vpop.f32.mrf.mxu0
        %v668 = vpop.f32.mrf.mxu0
        %669 = vdwg.mxu0
        %v670 = vld [vmem:[#allocation10] sm:$0xf]
        %v671 = vld [vmem:[#allocation10 + $0x4] sm:$0xf]
        %v672 = vld [vmem:[#allocation10 + $0x8] sm:$0xf]
        %v673 = vld [vmem:[#allocation10 + $0xc] sm:$0xf]
        %v678 = vunpack.c.l.b16 %v670
        %v679 = vunpack.c.l.b16 %v671
        %v680 = vunpack.c.l.b16 %v672
        %v681 = vunpack.c.l.b16 %v673
        %v682 = vpack.c.b16 %v679, %v678
        %v683 = vpack.c.b16 %v681, %v680
        %686 = vmatprep.subr.bf16.mxu0 0
        %687 = vmatpush1.bf16.msra.mxu0 0
        %688 = vmatprep.subr.bf16.mxu0 0
        %689 = vmatpush1.bf16.msra.mxu0 0
        %690 = vmatprep.subr.bf16.mxu0 0
        %691 = vmatpush1.bf16.msra.mxu0 0
        %692 = vmatprep.subr.bf16.mxu0 0
        %693 = vmatpush1.bf16.msra.mxu0 0
        %694 = vmatprep.subr.bf16.mxu0 0
        %695 = vmatpush1.bf16.msra.mxu0 0
        %696 = vmatprep.subr.bf16.mxu0 0
        %697 = vmatpush1.bf16.msra.mxu0 0
        %698 = vmatprep.subr.bf16.mxu0 0
        %699 = vmatpush1.bf16.msra.mxu0 %v683
        %700 = vmatprep.subr.bf16.mxu0 0
        %701 = vmatpush1.bf16.msra.mxu0 %v682
        %702 = vmatprep.subr.bf16.mxu0 0
        %703 = vmatpush2.bf16.msra.mxu0 0
        %704 = vmatprep.subr.bf16.mxu0 0
        %705 = vmatpush2.bf16.msra.mxu0 0
        %706 = vmatprep.subr.bf16.mxu0 0
        %707 = vmatpush2.bf16.msra.mxu0 0
        %708 = vmatprep.subr.bf16.mxu0 0
        %709 = vmatpush2.bf16.msra.mxu0 0
        %710 = vmatprep.subr.bf16.mxu0 0
        %711 = vmatpush2.bf16.msra.mxu0 0
        %712 = vmatprep.subr.bf16.mxu0 0
        %713 = vmatpush2.bf16.msra.mxu0 0
        %714 = vmatprep.subr.bf16.mxu0 0
        %715 = vmatpush2.bf16.msra.mxu0 0
        %716 = vmatprep.subr.bf16.mxu0 0
        %717 = vmatpush2.bf16.msra.mxu0 0
        %718 = vmatprep.mubr.bf16.mxu0 0
        %719 = vmatmul.mubr.bf16.gmra.mxu0 %v628
        %v720 = vpop.f32.mrf.mxu0
        %v721 = vadd.f32 0.0, %v720
        %v722 = vpop.f32.mrf.mxu0
        %v723 = vpop.f32.mrf.mxu0
        %v724 = vpop.f32.mrf.mxu0
        %725 = vdwg.mxu0
        %v726 = vld [vmem:[#allocation11] sm:$0xf]
        %v727 = vld [vmem:[#allocation11 + $0x4] sm:$0xf]
        %v728 = vld [vmem:[#allocation11 + $0x8] sm:$0xf]
        %v729 = vld [vmem:[#allocation11 + $0xc] sm:$0xf]
        %v734 = vunpack.c.l.b16 %v726
        %v735 = vunpack.c.l.b16 %v727
        %v736 = vunpack.c.l.b16 %v728
        %v737 = vunpack.c.l.b16 %v729
        %v738 = vpack.c.b16 %v735, %v734
        %v739 = vpack.c.b16 %v737, %v736
        %742 = vmatprep.subr.bf16.mxu0 0
        %743 = vmatpush1.bf16.msra.mxu0 0
        %744 = vmatprep.subr.bf16.mxu0 0
        %745 = vmatpush1.bf16.msra.mxu0 0
        %746 = vmatprep.subr.bf16.mxu0 0
        %747 = vmatpush1.bf16.msra.mxu0 0
        %748 = vmatprep.subr.bf16.mxu0 0
        %749 = vmatpush1.bf16.msra.mxu0 0
        %750 = vmatprep.subr.bf16.mxu0 0
        %751 = vmatpush1.bf16.msra.mxu0 0
        %752 = vmatprep.subr.bf16.mxu0 0
        %753 = vmatpush1.bf16.msra.mxu0 0
        %754 = vmatprep.subr.bf16.mxu0 0
        %755 = vmatpush1.bf16.msra.mxu0 %v739
        %756 = vmatprep.subr.bf16.mxu0 0
        %757 = vmatpush1.bf16.msra.mxu0 %v738
        %758 = vmatprep.subr.bf16.mxu0 0
        %759 = vmatpush2.bf16.msra.mxu0 0
        %760 = vmatprep.subr.bf16.mxu0 0
        %761 = vmatpush2.bf16.msra.mxu0 0
        %762 = vmatprep.subr.bf16.mxu0 0
        %763 = vmatpush2.bf16.msra.mxu0 0
        %764 = vmatprep.subr.bf16.mxu0 0
        %765 = vmatpush2.bf16.msra.mxu0 0
        %766 = vmatprep.subr.bf16.mxu0 0
        %767 = vmatpush2.bf16.msra.mxu0 0
        %768 = vmatprep.subr.bf16.mxu0 0
        %769 = vmatpush2.bf16.msra.mxu0 0
        %770 = vmatprep.subr.bf16.mxu0 0
        %771 = vmatpush2.bf16.msra.mxu0 0
        %772 = vmatprep.subr.bf16.mxu0 0
        %773 = vmatpush2.bf16.msra.mxu0 0
        %774 = vmatprep.mubr.bf16.mxu0 0
        %775 = vmatmul.mubr.bf16.gmra.mxu0 %v628
        %v776 = vpop.f32.mrf.mxu0
        %v777 = vadd.f32 0.0, %v776
        %v778 = vpop.f32.mrf.mxu0
        %v779 = vpop.f32.mrf.mxu0
        %v780 = vpop.f32.mrf.mxu0
        %781 = vdwg.mxu0
        %v782 = vpack.c.bf16 %v665, %v665
        %v783 = vpack.c.bf16 %v721, %v721
        %v784 = vpack.c.bf16 %v777, %v777
        %v786 = vsel %vm581, %v782, 0
        %v789 = vsel %vm581, %v783, 0
        %791 = vmatprep.subr.bf16.mxu0 0
        %792 = vmatpush1.bf16.xpose.msra.mxu0 0
        %793 = vmatprep.subr.bf16.mxu0 0
        %794 = vmatpush1.bf16.xpose.msra.mxu0 0
        %795 = vmatprep.subr.bf16.mxu0 0
        %796 = vmatpush1.bf16.xpose.msra.mxu0 0
        %797 = vmatprep.subr.bf16.mxu0 0
        %798 = vmatpush1.bf16.xpose.msra.mxu0 0
        %799 = vmatprep.subr.bf16.mxu0 0
        %800 = vmatpush1.bf16.xpose.msra.mxu0 0
        %801 = vmatprep.subr.bf16.mxu0 0
        %802 = vmatpush1.bf16.xpose.msra.mxu0 0
        %803 = vmatprep.subr.bf16.mxu0 0
        %804 = vmatpush1.bf16.xpose.msra.mxu0 0
        %805 = vmatprep.subr.bf16.mxu0 0
        %806 = vmatpush1.bf16.xpose.msra.mxu0 %v789
        %807 = vmatprep.subr.bf16.mxu0 0
        %808 = vmatpush2.bf16.xpose.msra.mxu0 0
        %809 = vmatprep.subr.bf16.mxu0 0
        %810 = vmatpush2.bf16.xpose.msra.mxu0 0
        %811 = vmatprep.subr.bf16.mxu0 0
        %812 = vmatpush2.bf16.xpose.msra.mxu0 0
        %813 = vmatprep.subr.bf16.mxu0 0
        %814 = vmatpush2.bf16.xpose.msra.mxu0 0
        %815 = vmatprep.subr.bf16.mxu0 0
        %816 = vmatpush2.bf16.xpose.msra.mxu0 0
        %817 = vmatprep.subr.bf16.mxu0 0
        %818 = vmatpush2.bf16.xpose.msra.mxu0 0
        %819 = vmatprep.subr.bf16.mxu0 0
        %820 = vmatpush2.bf16.xpose.msra.mxu0 0
        %821 = vmatprep.subr.bf16.mxu0 0
        %822 = vmatpush2.bf16.xpose.msra.mxu0 0
        %823 = vmatprep.mubr.bf16.mxu0 0
        %824 = vmatmul.mubr.bf16.gmra.mxu0 %v786
        %v825 = vpop.f32.mrf.mxu0
        %v826 = vadd.f32 0.0, %v825
        %v827 = vpop.f32.mrf.mxu0
        %v828 = vpop.f32.mrf.mxu0
        %v829 = vpop.f32.mrf.mxu0
        %830 = vdwg.mxu0
        %vm831 = vcmask 64512
        %v832 = vsel %vm831, %v826, -inf
        %833 = vmax.xlane.f32.xlu0 %v832
        %v834 = vpop.xlane.xlu0 %833
        %v835 = vsub.f32 %v826, %v834
        %v836 = vmul.f32 %v835, 1.442695
        %v837 = vpow.pop %v836
        %v838 = vsel %vm831, %v837, 0.0
        %839 = vadd.xlane.f32.xlu0 %v838
        %v840 = vpop.xlane.xlu0 %839
        %v841 = vrcp.pop %v840
        %v842 = vmul.f32 %v837, %v841
        %v843 = vpack.c.bf16 %v842, %v842
        %v845 = vsel %vm831, %v843, 0
        %vm847 = vcmask 1043456
        %v849 = vsel %vm847, %v784, 0
        %851 = vmatprep.subr.bf16.mxu0 0
        %852 = vmatpush1.bf16.msra.mxu0 0
        %853 = vmatprep.subr.bf16.mxu0 0
        %854 = vmatpush1.bf16.msra.mxu0 0
        %855 = vmatprep.subr.bf16.mxu0 0
        %856 = vmatpush1.bf16.msra.mxu0 0
        %857 = vmatprep.subr.bf16.mxu0 0
        %858 = vmatpush1.bf16.msra.mxu0 0
        %859 = vmatprep.subr.bf16.mxu0 0
        %860 = vmatpush1.bf16.msra.mxu0 0
        %861 = vmatprep.subr.bf16.mxu0 0
        %862 = vmatpush1.bf16.msra.mxu0 0
        %863 = vmatprep.subr.bf16.mxu0 0
        %864 = vmatpush1.bf16.msra.mxu0 0
        %865 = vmatprep.subr.bf16.mxu0 0
        %866 = vmatpush1.bf16.msra.mxu0 %v849
        %867 = vmatprep.subr.bf16.mxu0 0
        %868 = vmatpush2.bf16.msra.mxu0 0
        %869 = vmatprep.subr.bf16.mxu0 0
        %870 = vmatpush2.bf16.msra.mxu0 0
        %871 = vmatprep.subr.bf16.mxu0 0
        %872 = vmatpush2.bf16.msra.mxu0 0
        %873 = vmatprep.subr.bf16.mxu0 0
        %874 = vmatpush2.bf16.msra.mxu0 0
        %875 = vmatprep.subr.bf16.mxu0 0
        %876 = vmatpush2.bf16.msra.mxu0 0
        %877 = vmatprep.subr.bf16.mxu0 0
        %878 = vmatpush2.bf16.msra.mxu0 0
        %879 = vmatprep.subr.bf16.mxu0 0
        %880 = vmatpush2.bf16.msra.mxu0 0
        %881 = vmatprep.subr.bf16.mxu0 0
        %882 = vmatpush2.bf16.msra.mxu0 0
        %883 = vmatprep.mubr.bf16.mxu0 0
        %884 = vmatmul.mubr.bf16.gmra.mxu0 %v845
        %v885 = vpop.f32.mrf.mxu0
        %v886 = vadd.f32 0.0, %v885
        %v887 = vpop.f32.mrf.mxu0
        %v888 = vpop.f32.mrf.mxu0
        %v889 = vpop.f32.mrf.mxu0
        %890 = vdwg.mxu0
        %v891 = vpack.c.bf16 %v886, %v886
        %v892 = vld [vmem:[#allocation13] sm:$0xf]
        %v893 = vld [vmem:[#allocation13 + $0x4] sm:$0xf]
        %v894 = vld [vmem:[#allocation13 + $0x8] sm:$0xf]
        %v895 = vld [vmem:[#allocation13 + $0xc] sm:$0xf]
        %s896 = scalar_lea.vmem [#allocation8], 16
        %v897 = vld [vmem:[%s896] sm:$0xf]
        %v898 = vld [vmem:[%s896 + $0x4] sm:$0xf]
        %v899 = vld [vmem:[%s896 + $0x8] sm:$0xf]
        %v900 = vld [vmem:[%s896 + $0xc] sm:$0xf]
        %v905 = vunpack.c.l.b16 %v897
        %v906 = vunpack.c.l.b16 %v898
        %v907 = vunpack.c.l.b16 %v899
        %v908 = vunpack.c.l.b16 %v900
        %v909 = vpack.c.b16 %v906, %v905
        %v910 = vpack.c.b16 %v908, %v907
        %913 = vmatprep.subr.bf16.mxu0 0
        %914 = vmatpush1.bf16.msra.mxu0 0
        %915 = vmatprep.subr.bf16.mxu0 0
        %916 = vmatpush1.bf16.msra.mxu0 0
        %917 = vmatprep.subr.bf16.mxu0 0
        %918 = vmatpush1.bf16.msra.mxu0 0
        %919 = vmatprep.subr.bf16.mxu0 0
        %920 = vmatpush1.bf16.msra.mxu0 0
        %921 = vmatprep.subr.bf16.mxu0 0
        %922 = vmatpush1.bf16.msra.mxu0 0
        %923 = vmatprep.subr.bf16.mxu0 0
        %924 = vmatpush1.bf16.msra.mxu0 0
        %925 = vmatprep.subr.bf16.mxu0 0
        %926 = vmatpush1.bf16.msra.mxu0 %v910
        %927 = vmatprep.subr.bf16.mxu0 0
        %928 = vmatpush1.bf16.msra.mxu0 %v909
        %929 = vmatprep.subr.bf16.mxu0 0
        %930 = vmatpush2.bf16.msra.mxu0 0
        %931 = vmatprep.subr.bf16.mxu0 0
        %932 = vmatpush2.bf16.msra.mxu0 0
        %933 = vmatprep.subr.bf16.mxu0 0
        %934 = vmatpush2.bf16.msra.mxu0 0
        %935 = vmatprep.subr.bf16.mxu0 0
        %936 = vmatpush2.bf16.msra.mxu0 0
        %937 = vmatprep.subr.bf16.mxu0 0
        %938 = vmatpush2.bf16.msra.mxu0 0
        %939 = vmatprep.subr.bf16.mxu0 0
        %940 = vmatpush2.bf16.msra.mxu0 0
        %941 = vmatprep.subr.bf16.mxu0 0
        %942 = vmatpush2.bf16.msra.mxu0 0
        %943 = vmatprep.subr.bf16.mxu0 0
        %944 = vmatpush2.bf16.msra.mxu0 0
        %945 = vmatprep.mubr.bf16.mxu0 0
        %946 = vmatmul.mubr.bf16.gmra.mxu0 %v628
        %v947 = vpop.f32.mrf.mxu0
        %v948 = vadd.f32 0.0, %v947
        %v949 = vpop.f32.mrf.mxu0
        %v950 = vpop.f32.mrf.mxu0
        %v951 = vpop.f32.mrf.mxu0
        %952 = vdwg.mxu0
        %s953 = scalar_lea.vmem [#allocation10], 16
        %v954 = vld [vmem:[%s953] sm:$0xf]
        %v955 = vld [vmem:[%s953 + $0x4] sm:$0xf]
        %v956 = vld [vmem:[%s953 + $0x8] sm:$0xf]
        %v957 = vld [vmem:[%s953 + $0xc] sm:$0xf]
        %v962 = vunpack.c.l.b16 %v954
        %v963 = vunpack.c.l.b16 %v955
        %v964 = vunpack.c.l.b16 %v956
        %v965 = vunpack.c.l.b16 %v957
        %v966 = vpack.c.b16 %v963, %v962
        %v967 = vpack.c.b16 %v965, %v964
        %970 = vmatprep.subr.bf16.mxu0 0
        %971 = vmatpush1.bf16.msra.mxu0 0
        %972 = vmatprep.subr.bf16.mxu0 0
        %973 = vmatpush1.bf16.msra.mxu0 0
        %974 = vmatprep.subr.bf16.mxu0 0
        %975 = vmatpush1.bf16.msra.mxu0 0
        %976 = vmatprep.subr.bf16.mxu0 0
        %977 = vmatpush1.bf16.msra.mxu0 0
        %978 = vmatprep.subr.bf16.mxu0 0
        %979 = vmatpush1.bf16.msra.mxu0 0
        %980 = vmatprep.subr.bf16.mxu0 0
        %981 = vmatpush1.bf16.msra.mxu0 0
        %982 = vmatprep.subr.bf16.mxu0 0
        %983 = vmatpush1.bf16.msra.mxu0 %v967
        %984 = vmatprep.subr.bf16.mxu0 0
        %985 = vmatpush1.bf16.msra.mxu0 %v966
        %986 = vmatprep.subr.bf16.mxu0 0
        %987 = vmatpush2.bf16.msra.mxu0 0
        %988 = vmatprep.subr.bf16.mxu0 0
        %989 = vmatpush2.bf16.msra.mxu0 0
        %990 = vmatprep.subr.bf16.mxu0 0
        %991 = vmatpush2.bf16.msra.mxu0 0
        %992 = vmatprep.subr.bf16.mxu0 0
        %993 = vmatpush2.bf16.msra.mxu0 0
        %994 = vmatprep.subr.bf16.mxu0 0
        %995 = vmatpush2.bf16.msra.mxu0 0
        %996 = vmatprep.subr.bf16.mxu0 0
        %997 = vmatpush2.bf16.msra.mxu0 0
        %998 = vmatprep.subr.bf16.mxu0 0
        %999 = vmatpush2.bf16.msra.mxu0 0
        %1000 = vmatprep.subr.bf16.mxu0 0
        %1001 = vmatpush2.bf16.msra.mxu0 0
        %1002 = vmatprep.mubr.bf16.mxu0 0
        %1003 = vmatmul.mubr.bf16.gmra.mxu0 %v628
        %v1004 = vpop.f32.mrf.mxu0
        %v1005 = vadd.f32 0.0, %v1004
        %v1006 = vpop.f32.mrf.mxu0
        %v1007 = vpop.f32.mrf.mxu0
        %v1008 = vpop.f32.mrf.mxu0
        %1009 = vdwg.mxu0
        %s1010 = scalar_lea.vmem [#allocation11], 16
        %v1011 = vld [vmem:[%s1010] sm:$0xf]
        %v1012 = vld [vmem:[%s1010 + $0x4] sm:$0xf]
        %v1013 = vld [vmem:[%s1010 + $0x8] sm:$0xf]
        %v1014 = vld [vmem:[%s1010 + $0xc] sm:$0xf]
        %v1019 = vunpack.c.l.b16 %v1011
        %v1020 = vunpack.c.l.b16 %v1012
        %v1021 = vunpack.c.l.b16 %v1013
        %v1022 = vunpack.c.l.b16 %v1014
        %v1023 = vpack.c.b16 %v1020, %v1019
        %v1024 = vpack.c.b16 %v1022, %v1021
        %1027 = vmatprep.subr.bf16.mxu0 0
        %1028 = vmatpush1.bf16.msra.mxu0 0
        %1029 = vmatprep.subr.bf16.mxu0 0
        %1030 = vmatpush1.bf16.msra.mxu0 0
        %1031 = vmatprep.subr.bf16.mxu0 0
        %1032 = vmatpush1.bf16.msra.mxu0 0
        %1033 = vmatprep.subr.bf16.mxu0 0
        %1034 = vmatpush1.bf16.msra.mxu0 0
        %1035 = vmatprep.subr.bf16.mxu0 0
        %1036 = vmatpush1.bf16.msra.mxu0 0
        %1037 = vmatprep.subr.bf16.mxu0 0
        %1038 = vmatpush1.bf16.msra.mxu0 0
        %1039 = vmatprep.subr.bf16.mxu0 0
        %1040 = vmatpush1.bf16.msra.mxu0 %v1024
        %1041 = vmatprep.subr.bf16.mxu0 0
        %1042 = vmatpush1.bf16.msra.mxu0 %v1023
        %1043 = vmatprep.subr.bf16.mxu0 0
        %1044 = vmatpush2.bf16.msra.mxu0 0
        %1045 = vmatprep.subr.bf16.mxu0 0
        %1046 = vmatpush2.bf16.msra.mxu0 0
        %1047 = vmatprep.subr.bf16.mxu0 0
        %1048 = vmatpush2.bf16.msra.mxu0 0
        %1049 = vmatprep.subr.bf16.mxu0 0
        %1050 = vmatpush2.bf16.msra.mxu0 0
        %1051 = vmatprep.subr.bf16.mxu0 0
        %1052 = vmatpush2.bf16.msra.mxu0 0
        %1053 = vmatprep.subr.bf16.mxu0 0
        %1054 = vmatpush2.bf16.msra.mxu0 0
        %1055 = vmatprep.subr.bf16.mxu0 0
        %1056 = vmatpush2.bf16.msra.mxu0 0
        %1057 = vmatprep.subr.bf16.mxu0 0
        %1058 = vmatpush2.bf16.msra.mxu0 0
        %1059 = vmatprep.mubr.bf16.mxu0 0
        %1060 = vmatmul.mubr.bf16.gmra.mxu0 %v628
        %v1061 = vpop.f32.mrf.mxu0
        %v1062 = vadd.f32 0.0, %v1061
        %v1063 = vpop.f32.mrf.mxu0
        %v1064 = vpop.f32.mrf.mxu0
        %v1065 = vpop.f32.mrf.mxu0
        %1066 = vdwg.mxu0
        %v1067 = vpack.c.bf16 %v948, %v948
        %v1068 = vpack.c.bf16 %v1005, %v1005
        %v1069 = vpack.c.bf16 %v1062, %v1062
        %v1071 = vsel %vm581, %v1067, 0
        %v1074 = vsel %vm581, %v1068, 0
        %1076 = vmatprep.subr.bf16.mxu0 0
        %1077 = vmatpush1.bf16.xpose.msra.mxu0 0
        %1078 = vmatprep.subr.bf16.mxu0 0
        %1079 = vmatpush1.bf16.xpose.msra.mxu0 0
        %1080 = vmatprep.subr.bf16.mxu0 0
        %1081 = vmatpush1.bf16.xpose.msra.mxu0 0
        %1082 = vmatprep.subr.bf16.mxu0 0
        %1083 = vmatpush1.bf16.xpose.msra.mxu0 0
        %1084 = vmatprep.subr.bf16.mxu0 0
        %1085 = vmatpush1.bf16.xpose.msra.mxu0 0
        %1086 = vmatprep.subr.bf16.mxu0 0
        %1087 = vmatpush1.bf16.xpose.msra.mxu0 0
        %1088 = vmatprep.subr.bf16.mxu0 0
        %1089 = vmatpush1.bf16.xpose.msra.mxu0 0
        %1090 = vmatprep.subr.bf16.mxu0 0
        %1091 = vmatpush1.bf16.xpose.msra.mxu0 %v1074
        %1092 = vmatprep.subr.bf16.mxu0 0
        %1093 = vmatpush2.bf16.xpose.msra.mxu0 0
        %1094 = vmatprep.subr.bf16.mxu0 0
        %1095 = vmatpush2.bf16.xpose.msra.mxu0 0
        %1096 = vmatprep.subr.bf16.mxu0 0
        %1097 = vmatpush2.bf16.xpose.msra.mxu0 0
        %1098 = vmatprep.subr.bf16.mxu0 0
        %1099 = vmatpush2.bf16.xpose.msra.mxu0 0
        %1100 = vmatprep.subr.bf16.mxu0 0
        %1101 = vmatpush2.bf16.xpose.msra.mxu0 0
        %1102 = vmatprep.subr.bf16.mxu0 0
        %1103 = vmatpush2.bf16.xpose.msra.mxu0 0
        %1104 = vmatprep.subr.bf16.mxu0 0
        %1105 = vmatpush2.bf16.xpose.msra.mxu0 0
        %1106 = vmatprep.subr.bf16.mxu0 0
        %1107 = vmatpush2.bf16.xpose.msra.mxu0 0
        %1108 = vmatprep.mubr.bf16.mxu0 0
        %1109 = vmatmul.mubr.bf16.gmra.mxu0 %v1071
        %v1110 = vpop.f32.mrf.mxu0
        %v1111 = vadd.f32 0.0, %v1110
        %v1112 = vpop.f32.mrf.mxu0
        %v1113 = vpop.f32.mrf.mxu0
        %v1114 = vpop.f32.mrf.mxu0
        %1115 = vdwg.mxu0
        %v1116 = vsel %vm831, %v1111, -inf
        %1117 = vmax.xlane.f32.xlu0 %v1116
        %v1118 = vpop.xlane.xlu0 %1117
        %v1119 = vsub.f32 %v1111, %v1118
        %v1120 = vmul.f32 %v1119, 1.442695
        %v1121 = vpow.pop %v1120
        %v1122 = vsel %vm831, %v1121, 0.0
        %1123 = vadd.xlane.f32.xlu0 %v1122
        %v1124 = vpop.xlane.xlu0 %1123
        %v1125 = vrcp.pop %v1124
        %v1126 = vmul.f32 %v1121, %v1125
        %v1127 = vpack.c.bf16 %v1126, %v1126
        %v1129 = vsel %vm831, %v1127, 0
        %v1132 = vsel %vm847, %v1069, 0
        %1134 = vmatprep.subr.bf16.mxu0 0
        %1135 = vmatpush1.bf16.msra.mxu0 0
        %1136 = vmatprep.subr.bf16.mxu0 0
        %1137 = vmatpush1.bf16.msra.mxu0 0
        %1138 = vmatprep.subr.bf16.mxu0 0
        %1139 = vmatpush1.bf16.msra.mxu0 0
        %1140 = vmatprep.subr.bf16.mxu0 0
        %1141 = vmatpush1.bf16.msra.mxu0 0
        %1142 = vmatprep.subr.bf16.mxu0 0
        %1143 = vmatpush1.bf16.msra.mxu0 0
        %1144 = vmatprep.subr.bf16.mxu0 0
        %1145 = vmatpush1.bf16.msra.mxu0 0
        %1146 = vmatprep.subr.bf16.mxu0 0
        %1147 = vmatpush1.bf16.msra.mxu0 0
        %1148 = vmatprep.subr.bf16.mxu0 0
        %1149 = vmatpush1.bf16.msra.mxu0 %v1132
        %1150 = vmatprep.subr.bf16.mxu0 0
        %1151 = vmatpush2.bf16.msra.mxu0 0
        %1152 = vmatprep.subr.bf16.mxu0 0
        %1153 = vmatpush2.bf16.msra.mxu0 0
        %1154 = vmatprep.subr.bf16.mxu0 0
        %1155 = vmatpush2.bf16.msra.mxu0 0
        %1156 = vmatprep.subr.bf16.mxu0 0
        %1157 = vmatpush2.bf16.msra.mxu0 0
        %1158 = vmatprep.subr.bf16.mxu0 0
        %1159 = vmatpush2.bf16.msra.mxu0 0
        %1160 = vmatprep.subr.bf16.mxu0 0
        %1161 = vmatpush2.bf16.msra.mxu0 0
        %1162 = vmatprep.subr.bf16.mxu0 0
        %1163 = vmatpush2.bf16.msra.mxu0 0
        %1164 = vmatprep.subr.bf16.mxu0 0
        %1165 = vmatpush2.bf16.msra.mxu0 0
        %1166 = vmatprep.mubr.bf16.mxu0 0
        %1167 = vmatmul.mubr.bf16.gmra.mxu0 %v1129
        %v1168 = vpop.f32.mrf.mxu0
        %v1169 = vadd.f32 0.0, %v1168
        %v1170 = vpop.f32.mrf.mxu0
        %v1171 = vpop.f32.mrf.mxu0
        %v1172 = vpop.f32.mrf.mxu0
        %1173 = vdwg.mxu0
        %v1174 = vpack.c.bf16 %v1169, %v1169
        %s1175 = scalar_lea.vmem [#allocation13], 16
        %v1176 = vld [vmem:[%s1175] sm:$0xf]
        %v1177 = vld [vmem:[%s1175 + $0x4] sm:$0xf]
        %v1178 = vld [vmem:[%s1175 + $0x8] sm:$0xf]
        %v1179 = vld [vmem:[%s1175 + $0xc] sm:$0xf]
        %v1184 = vunpack.c.l.b16 %v1176
        %v1185 = vunpack.c.l.b16 %v1177
        %v1186 = vunpack.c.l.b16 %v1178
        %v1187 = vunpack.c.l.b16 %v1179
        %v1188 = vpack.c.b16 %v1185, %v1184
        %v1189 = vpack.c.b16 %v1187, %v1186
        %v1193 = vsel %vm581, %v1174, 0
        %1195 = vmatprep.subr.bf16.mxu0 0
        %1196 = vmatpush1.bf16.msra.mxu0 0
        %1197 = vmatprep.subr.bf16.mxu0 0
        %1198 = vmatpush1.bf16.msra.mxu0 0
        %1199 = vmatprep.subr.bf16.mxu0 0
        %1200 = vmatpush1.bf16.msra.mxu0 0
        %1201 = vmatprep.subr.bf16.mxu0 0
        %1202 = vmatpush1.bf16.msra.mxu0 0
        %1203 = vmatprep.subr.bf16.mxu0 0
        %1204 = vmatpush1.bf16.msra.mxu0 0
        %1205 = vmatprep.subr.bf16.mxu0 0
        %1206 = vmatpush1.bf16.msra.mxu0 0
        %1207 = vmatprep.subr.bf16.mxu0 0
        %1208 = vmatpush1.bf16.msra.mxu0 %v1189
        %1209 = vmatprep.subr.bf16.mxu0 0
        %1210 = vmatpush1.bf16.msra.mxu0 %v1188
        %1211 = vmatprep.subr.bf16.mxu0 0
        %1212 = vmatpush2.bf16.msra.mxu0 0
        %1213 = vmatprep.subr.bf16.mxu0 0
        %1214 = vmatpush2.bf16.msra.mxu0 0
        %1215 = vmatprep.subr.bf16.mxu0 0
        %1216 = vmatpush2.bf16.msra.mxu0 0
        %1217 = vmatprep.subr.bf16.mxu0 0
        %1218 = vmatpush2.bf16.msra.mxu0 0
        %1219 = vmatprep.subr.bf16.mxu0 0
        %1220 = vmatpush2.bf16.msra.mxu0 0
        %1221 = vmatprep.subr.bf16.mxu0 0
        %1222 = vmatpush2.bf16.msra.mxu0 0
        %1223 = vmatprep.subr.bf16.mxu0 0
        %1224 = vmatpush2.bf16.msra.mxu0 0
        %1225 = vmatprep.subr.bf16.mxu0 0
        %1226 = vmatpush2.bf16.msra.mxu0 0
        %1227 = vmatprep.mubr.bf16.mxu0 0
        %1228 = vmatmul.mubr.bf16.gmra.mxu0 %v1193
        %v1229 = vpop.f32.mrf.mxu0
        %v1230 = vadd.f32 0.0, %v1229
        %v1231 = vpop.f32.mrf.mxu0
        %v1232 = vpop.f32.mrf.mxu0
        %v1233 = vpop.f32.mrf.mxu0
        %1234 = vdwg.mxu0
        %v1239 = vunpack.c.l.b16 %v892
        %v1240 = vunpack.c.l.b16 %v893
        %v1241 = vunpack.c.l.b16 %v894
        %v1242 = vunpack.c.l.b16 %v895
        %v1243 = vpack.c.b16 %v1240, %v1239
        %v1244 = vpack.c.b16 %v1242, %v1241
        %v1248 = vsel %vm581, %v891, 0
        %1250 = vmatprep.subr.bf16.mxu0 0
        %1251 = vmatpush1.bf16.msra.mxu0 0
        %1252 = vmatprep.subr.bf16.mxu0 0
        %1253 = vmatpush1.bf16.msra.mxu0 0
        %1254 = vmatprep.subr.bf16.mxu0 0
        %1255 = vmatpush1.bf16.msra.mxu0 0
        %1256 = vmatprep.subr.bf16.mxu0 0
        %1257 = vmatpush1.bf16.msra.mxu0 0
        %1258 = vmatprep.subr.bf16.mxu0 0
        %1259 = vmatpush1.bf16.msra.mxu0 0
        %1260 = vmatprep.subr.bf16.mxu0 0
        %1261 = vmatpush1.bf16.msra.mxu0 0
        %1262 = vmatprep.subr.bf16.mxu0 0
        %1263 = vmatpush1.bf16.msra.mxu0 %v1244
        %1264 = vmatprep.subr.bf16.mxu0 0
        %1265 = vmatpush1.bf16.msra.mxu0 %v1243
        %1266 = vmatprep.subr.bf16.mxu0 0
        %1267 = vmatpush2.bf16.msra.mxu0 0
        %1268 = vmatprep.subr.bf16.mxu0 0
        %1269 = vmatpush2.bf16.msra.mxu0 0
        %1270 = vmatprep.subr.bf16.mxu0 0
        %1271 = vmatpush2.bf16.msra.mxu0 0
        %1272 = vmatprep.subr.bf16.mxu0 0
        %1273 = vmatpush2.bf16.msra.mxu0 0
        %1274 = vmatprep.subr.bf16.mxu0 0
        %1275 = vmatpush2.bf16.msra.mxu0 0
        %1276 = vmatprep.subr.bf16.mxu0 0
        %1277 = vmatpush2.bf16.msra.mxu0 0
        %1278 = vmatprep.subr.bf16.mxu0 0
        %1279 = vmatpush2.bf16.msra.mxu0 0
        %1280 = vmatprep.subr.bf16.mxu0 0
        %1281 = vmatpush2.bf16.msra.mxu0 0
        %1282 = vmatprep.mubr.bf16.mxu0 0
        %1283 = vmatmul.mubr.bf16.gmra.mxu0 %v1248
        %v1284 = vpop.f32.mrf.mxu0
        %v1285 = vadd.f32 %v1230, %v1284
        %v1286 = vpop.f32.mrf.mxu0
        %v1287 = vpop.f32.mrf.mxu0
        %v1288 = vpop.f32.mrf.mxu0
        %1289 = vdwg.mxu0
        %s1290 = scalar_lea.vmem [#allocation8], 32
        %v1291 = vld [vmem:[%s1290] sm:$0xf]
        %v1292 = vld [vmem:[%s1290 + $0x4] sm:$0xf]
        %v1293 = vld [vmem:[%s1290 + $0x8] sm:$0xf]
        %v1294 = vld [vmem:[%s1290 + $0xc] sm:$0xf]
        %v1299 = vunpack.c.l.b16 %v1291
        %v1300 = vunpack.c.l.b16 %v1292
        %v1301 = vunpack.c.l.b16 %v1293
        %v1302 = vunpack.c.l.b16 %v1294
        %v1303 = vpack.c.b16 %v1300, %v1299
        %v1304 = vpack.c.b16 %v1302, %v1301
        %1307 = vmatprep.subr.bf16.mxu0 0
        %1308 = vmatpush1.bf16.msra.mxu0 0
        %1309 = vmatprep.subr.bf16.mxu0 0
        %1310 = vmatpush1.bf16.msra.mxu0 0
        %1311 = vmatprep.subr.bf16.mxu0 0
        %1312 = vmatpush1.bf16.msra.mxu0 0
        %1313 = vmatprep.subr.bf16.mxu0 0
        %1314 = vmatpush1.bf16.msra.mxu0 0
        %1315 = vmatprep.subr.bf16.mxu0 0
        %1316 = vmatpush1.bf16.msra.mxu0 0
        %1317 = vmatprep.subr.bf16.mxu0 0
        %1318 = vmatpush1.bf16.msra.mxu0 0
        %1319 = vmatprep.subr.bf16.mxu0 0
        %1320 = vmatpush1.bf16.msra.mxu0 %v1304
        %1321 = vmatprep.subr.bf16.mxu0 0
        %1322 = vmatpush1.bf16.msra.mxu0 %v1303
        %1323 = vmatprep.subr.bf16.mxu0 0
        %1324 = vmatpush2.bf16.msra.mxu0 0
        %1325 = vmatprep.subr.bf16.mxu0 0
        %1326 = vmatpush2.bf16.msra.mxu0 0
        %1327 = vmatprep.subr.bf16.mxu0 0
        %1328 = vmatpush2.bf16.msra.mxu0 0
        %1329 = vmatprep.subr.bf16.mxu0 0
        %1330 = vmatpush2.bf16.msra.mxu0 0
        %1331 = vmatprep.subr.bf16.mxu0 0
        %1332 = vmatpush2.bf16.msra.mxu0 0
        %1333 = vmatprep.subr.bf16.mxu0 0
        %1334 = vmatpush2.bf16.msra.mxu0 0
        %1335 = vmatprep.subr.bf16.mxu0 0
        %1336 = vmatpush2.bf16.msra.mxu0 0
        %1337 = vmatprep.subr.bf16.mxu0 0
        %1338 = vmatpush2.bf16.msra.mxu0 0
        %1339 = vmatprep.mubr.bf16.mxu0 0
        %1340 = vmatmul.mubr.bf16.gmra.mxu0 %v628
        %v1341 = vpop.f32.mrf.mxu0
        %v1342 = vadd.f32 0.0, %v1341
        %v1343 = vpop.f32.mrf.mxu0
        %v1344 = vpop.f32.mrf.mxu0
        %v1345 = vpop.f32.mrf.mxu0
        %1346 = vdwg.mxu0
        %s1347 = scalar_lea.vmem [#allocation10], 32
        %v1348 = vld [vmem:[%s1347] sm:$0xf]
        %v1349 = vld [vmem:[%s1347 + $0x4] sm:$0xf]
        %v1350 = vld [vmem:[%s1347 + $0x8] sm:$0xf]
        %v1351 = vld [vmem:[%s1347 + $0xc] sm:$0xf]
        %v1356 = vunpack.c.l.b16 %v1348
        %v1357 = vunpack.c.l.b16 %v1349
        %v1358 = vunpack.c.l.b16 %v1350
        %v1359 = vunpack.c.l.b16 %v1351
        %v1360 = vpack.c.b16 %v1357, %v1356
        %v1361 = vpack.c.b16 %v1359, %v1358
        %1364 = vmatprep.subr.bf16.mxu0 0
        %1365 = vmatpush1.bf16.msra.mxu0 0
        %1366 = vmatprep.subr.bf16.mxu0 0
        %1367 = vmatpush1.bf16.msra.mxu0 0
        %1368 = vmatprep.subr.bf16.mxu0 0
        %1369 = vmatpush1.bf16.msra.mxu0 0
        %1370 = vmatprep.subr.bf16.mxu0 0
        %1371 = vmatpush1.bf16.msra.mxu0 0
        %1372 = vmatprep.subr.bf16.mxu0 0
        %1373 = vmatpush1.bf16.msra.mxu0 0
        %1374 = vmatprep.subr.bf16.mxu0 0
        %1375 = vmatpush1.bf16.msra.mxu0 0
        %1376 = vmatprep.subr.bf16.mxu0 0
        %1377 = vmatpush1.bf16.msra.mxu0 %v1361
        %1378 = vmatprep.subr.bf16.mxu0 0
        %1379 = vmatpush1.bf16.msra.mxu0 %v1360
        %1380 = vmatprep.subr.bf16.mxu0 0
        %1381 = vmatpush2.bf16.msra.mxu0 0
        %1382 = vmatprep.subr.bf16.mxu0 0
        %1383 = vmatpush2.bf16.msra.mxu0 0
        %1384 = vmatprep.subr.bf16.mxu0 0
        %1385 = vmatpush2.bf16.msra.mxu0 0
        %1386 = vmatprep.subr.bf16.mxu0 0
        %1387 = vmatpush2.bf16.msra.mxu0 0
        %1388 = vmatprep.subr.bf16.mxu0 0
        %1389 = vmatpush2.bf16.msra.mxu0 0
        %1390 = vmatprep.subr.bf16.mxu0 0
        %1391 = vmatpush2.bf16.msra.mxu0 0
        %1392 = vmatprep.subr.bf16.mxu0 0
        %1393 = vmatpush2.bf16.msra.mxu0 0
        %1394 = vmatprep.subr.bf16.mxu0 0
        %1395 = vmatpush2.bf16.msra.mxu0 0
        %1396 = vmatprep.mubr.bf16.mxu0 0
        %1397 = vmatmul.mubr.bf16.gmra.mxu0 %v628
        %v1398 = vpop.f32.mrf.mxu0
        %v1399 = vadd.f32 0.0, %v1398
        %v1400 = vpop.f32.mrf.mxu0
        %v1401 = vpop.f32.mrf.mxu0
        %v1402 = vpop.f32.mrf.mxu0
        %1403 = vdwg.mxu0
        %s1404 = scalar_lea.vmem [#allocation11], 32
        %v1405 = vld [vmem:[%s1404] sm:$0xf]
        %v1406 = vld [vmem:[%s1404 + $0x4] sm:$0xf]
        %v1407 = vld [vmem:[%s1404 + $0x8] sm:$0xf]
        %v1408 = vld [vmem:[%s1404 + $0xc] sm:$0xf]
        %v1413 = vunpack.c.l.b16 %v1405
        %v1414 = vunpack.c.l.b16 %v1406
        %v1415 = vunpack.c.l.b16 %v1407
        %v1416 = vunpack.c.l.b16 %v1408
        %v1417 = vpack.c.b16 %v1414, %v1413
        %v1418 = vpack.c.b16 %v1416, %v1415
        %1421 = vmatprep.subr.bf16.mxu0 0
        %1422 = vmatpush1.bf16.msra.mxu0 0
        %1423 = vmatprep.subr.bf16.mxu0 0
        %1424 = vmatpush1.bf16.msra.mxu0 0
        %1425 = vmatprep.subr.bf16.mxu0 0
        %1426 = vmatpush1.bf16.msra.mxu0 0
        %1427 = vmatprep.subr.bf16.mxu0 0
        %1428 = vmatpush1.bf16.msra.mxu0 0
        %1429 = vmatprep.subr.bf16.mxu0 0
        %1430 = vmatpush1.bf16.msra.mxu0 0
        %1431 = vmatprep.subr.bf16.mxu0 0
        %1432 = vmatpush1.bf16.msra.mxu0 0
        %1433 = vmatprep.subr.bf16.mxu0 0
        %1434 = vmatpush1.bf16.msra.mxu0 %v1418
        %1435 = vmatprep.subr.bf16.mxu0 0
        %1436 = vmatpush1.bf16.msra.mxu0 %v1417
        %1437 = vmatprep.subr.bf16.mxu0 0
        %1438 = vmatpush2.bf16.msra.mxu0 0
        %1439 = vmatprep.subr.bf16.mxu0 0
        %1440 = vmatpush2.bf16.msra.mxu0 0
        %1441 = vmatprep.subr.bf16.mxu0 0
        %1442 = vmatpush2.bf16.msra.mxu0 0
        %1443 = vmatprep.subr.bf16.mxu0 0
        %1444 = vmatpush2.bf16.msra.mxu0 0
        %1445 = vmatprep.subr.bf16.mxu0 0
        %1446 = vmatpush2.bf16.msra.mxu0 0
        %1447 = vmatprep.subr.bf16.mxu0 0
        %1448 = vmatpush2.bf16.msra.mxu0 0
        %1449 = vmatprep.subr.bf16.mxu0 0
        %1450 = vmatpush2.bf16.msra.mxu0 0
        %1451 = vmatprep.subr.bf16.mxu0 0
        %1452 = vmatpush2.bf16.msra.mxu0 0
        %1453 = vmatprep.mubr.bf16.mxu0 0
        %1454 = vmatmul.mubr.bf16.gmra.mxu0 %v628
        %v1455 = vpop.f32.mrf.mxu0
        %v1456 = vadd.f32 0.0, %v1455
        %v1457 = vpop.f32.mrf.mxu0
        %v1458 = vpop.f32.mrf.mxu0
        %v1459 = vpop.f32.mrf.mxu0
        %1460 = vdwg.mxu0
        %v1461 = vpack.c.bf16 %v1342, %v1342
        %v1462 = vpack.c.bf16 %v1399, %v1399
        %v1463 = vpack.c.bf16 %v1456, %v1456
        %v1465 = vsel %vm581, %v1461, 0
        %v1468 = vsel %vm581, %v1462, 0
        %1470 = vmatprep.subr.bf16.mxu0 0
        %1471 = vmatpush1.bf16.xpose.msra.mxu0 0
        %1472 = vmatprep.subr.bf16.mxu0 0
        %1473 = vmatpush1.bf16.xpose.msra.mxu0 0
        %1474 = vmatprep.subr.bf16.mxu0 0
        %1475 = vmatpush1.bf16.xpose.msra.mxu0 0
        %1476 = vmatprep.subr.bf16.mxu0 0
        %1477 = vmatpush1.bf16.xpose.msra.mxu0 0
        %1478 = vmatprep.subr.bf16.mxu0 0
        %1479 = vmatpush1.bf16.xpose.msra.mxu0 0
        %1480 = vmatprep.subr.bf16.mxu0 0
        %1481 = vmatpush1.bf16.xpose.msra.mxu0 0
        %1482 = vmatprep.subr.bf16.mxu0 0
        %1483 = vmatpush1.bf16.xpose.msra.mxu0 0
        %1484 = vmatprep.subr.bf16.mxu0 0
        %1485 = vmatpush1.bf16.xpose.msra.mxu0 %v1468
        %1486 = vmatprep.subr.bf16.mxu0 0
        %1487 = vmatpush2.bf16.xpose.msra.mxu0 0
        %1488 = vmatprep.subr.bf16.mxu0 0
        %1489 = vmatpush2.bf16.xpose.msra.mxu0 0
        %1490 = vmatprep.subr.bf16.mxu0 0
        %1491 = vmatpush2.bf16.xpose.msra.mxu0 0
        %1492 = vmatprep.subr.bf16.mxu0 0
        %1493 = vmatpush2.bf16.xpose.msra.mxu0 0
        %1494 = vmatprep.subr.bf16.mxu0 0
        %1495 = vmatpush2.bf16.xpose.msra.mxu0 0
        %1496 = vmatprep.subr.bf16.mxu0 0
        %1497 = vmatpush2.bf16.xpose.msra.mxu0 0
        %1498 = vmatprep.subr.bf16.mxu0 0
        %1499 = vmatpush2.bf16.xpose.msra.mxu0 0
        %1500 = vmatprep.subr.bf16.mxu0 0
        %1501 = vmatpush2.bf16.xpose.msra.mxu0 0
        %1502 = vmatprep.mubr.bf16.mxu0 0
        %1503 = vmatmul.mubr.bf16.gmra.mxu0 %v1465
        %v1504 = vpop.f32.mrf.mxu0
        %v1505 = vadd.f32 0.0, %v1504
        %v1506 = vpop.f32.mrf.mxu0
        %v1507 = vpop.f32.mrf.mxu0
        %v1508 = vpop.f32.mrf.mxu0
        %1509 = vdwg.mxu0
        %v1510 = vsel %vm831, %v1505, -inf
        %1511 = vmax.xlane.f32.xlu0 %v1510
        %v1512 = vpop.xlane.xlu0 %1511
        %v1513 = vsub.f32 %v1505, %v1512
        %v1514 = vmul.f32 %v1513, 1.442695
        %v1515 = vpow.pop %v1514
        %v1516 = vsel %vm831, %v1515, 0.0
        %1517 = vadd.xlane.f32.xlu0 %v1516
        %v1518 = vpop.xlane.xlu0 %1517
        %v1519 = vrcp.pop %v1518
        %v1520 = vmul.f32 %v1515, %v1519
        %v1521 = vpack.c.bf16 %v1520, %v1520
        %v1523 = vsel %vm831, %v1521, 0
        %v1526 = vsel %vm847, %v1463, 0
        %1528 = vmatprep.subr.bf16.mxu0 0
        %1529 = vmatpush1.bf16.msra.mxu0 0
        %1530 = vmatprep.subr.bf16.mxu0 0
        %1531 = vmatpush1.bf16.msra.mxu0 0
        %1532 = vmatprep.subr.bf16.mxu0 0
        %1533 = vmatpush1.bf16.msra.mxu0 0
        %1534 = vmatprep.subr.bf16.mxu0 0
        %1535 = vmatpush1.bf16.msra.mxu0 0
        %1536 = vmatprep.subr.bf16.mxu0 0
        %1537 = vmatpush1.bf16.msra.mxu0 0
        %1538 = vmatprep.subr.bf16.mxu0 0
        %1539 = vmatpush1.bf16.msra.mxu0 0
        %1540 = vmatprep.subr.bf16.mxu0 0
        %1541 = vmatpush1.bf16.msra.mxu0 0
        %1542 = vmatprep.subr.bf16.mxu0 0
        %1543 = vmatpush1.bf16.msra.mxu0 %v1526
        %1544 = vmatprep.subr.bf16.mxu0 0
        %1545 = vmatpush2.bf16.msra.mxu0 0
        %1546 = vmatprep.subr.bf16.mxu0 0
        %1547 = vmatpush2.bf16.msra.mxu0 0
        %1548 = vmatprep.subr.bf16.mxu0 0
        %1549 = vmatpush2.bf16.msra.mxu0 0
        %1550 = vmatprep.subr.bf16.mxu0 0
        %1551 = vmatpush2.bf16.msra.mxu0 0
        %1552 = vmatprep.subr.bf16.mxu0 0
        %1553 = vmatpush2.bf16.msra.mxu0 0
        %1554 = vmatprep.subr.bf16.mxu0 0
        %1555 = vmatpush2.bf16.msra.mxu0 0
        %1556 = vmatprep.subr.bf16.mxu0 0
        %1557 = vmatpush2.bf16.msra.mxu0 0
        %1558 = vmatprep.subr.bf16.mxu0 0
        %1559 = vmatpush2.bf16.msra.mxu0 0
        %1560 = vmatprep.mubr.bf16.mxu0 0
        %1561 = vmatmul.mubr.bf16.gmra.mxu0 %v1523
        %v1562 = vpop.f32.mrf.mxu0
        %v1563 = vadd.f32 0.0, %v1562
        %v1564 = vpop.f32.mrf.mxu0
        %v1565 = vpop.f32.mrf.mxu0
        %v1566 = vpop.f32.mrf.mxu0
        %1567 = vdwg.mxu0
        %v1568 = vpack.c.bf16 %v1563, %v1563
        %s1569 = scalar_lea.vmem [#allocation13], 32
        %v1570 = vld [vmem:[%s1569] sm:$0xf]
        %v1571 = vld [vmem:[%s1569 + $0x4] sm:$0xf]
        %v1572 = vld [vmem:[%s1569 + $0x8] sm:$0xf]
        %v1573 = vld [vmem:[%s1569 + $0xc] sm:$0xf]
        %v1578 = vunpack.c.l.b16 %v1570
        %v1579 = vunpack.c.l.b16 %v1571
        %v1580 = vunpack.c.l.b16 %v1572
        %v1581 = vunpack.c.l.b16 %v1573
        %v1582 = vpack.c.b16 %v1579, %v1578
        %v1583 = vpack.c.b16 %v1581, %v1580
        %v1587 = vsel %vm581, %v1568, 0
        %1589 = vmatprep.subr.bf16.mxu0 0
        %1590 = vmatpush1.bf16.msra.mxu0 0
        %1591 = vmatprep.subr.bf16.mxu0 0
        %1592 = vmatpush1.bf16.msra.mxu0 0
        %1593 = vmatprep.subr.bf16.mxu0 0
        %1594 = vmatpush1.bf16.msra.mxu0 0
        %1595 = vmatprep.subr.bf16.mxu0 0
        %1596 = vmatpush1.bf16.msra.mxu0 0
        %1597 = vmatprep.subr.bf16.mxu0 0
        %1598 = vmatpush1.bf16.msra.mxu0 0
        %1599 = vmatprep.subr.bf16.mxu0 0
        %1600 = vmatpush1.bf16.msra.mxu0 0
        %1601 = vmatprep.subr.bf16.mxu0 0
        %1602 = vmatpush1.bf16.msra.mxu0 %v1583
        %1603 = vmatprep.subr.bf16.mxu0 0
        %1604 = vmatpush1.bf16.msra.mxu0 %v1582
        %1605 = vmatprep.subr.bf16.mxu0 0
        %1606 = vmatpush2.bf16.msra.mxu0 0
        %1607 = vmatprep.subr.bf16.mxu0 0
        %1608 = vmatpush2.bf16.msra.mxu0 0
        %1609 = vmatprep.subr.bf16.mxu0 0
        %1610 = vmatpush2.bf16.msra.mxu0 0
        %1611 = vmatprep.subr.bf16.mxu0 0
        %1612 = vmatpush2.bf16.msra.mxu0 0
        %1613 = vmatprep.subr.bf16.mxu0 0
        %1614 = vmatpush2.bf16.msra.mxu0 0
        %1615 = vmatprep.subr.bf16.mxu0 0
        %1616 = vmatpush2.bf16.msra.mxu0 0
        %1617 = vmatprep.subr.bf16.mxu0 0
        %1618 = vmatpush2.bf16.msra.mxu0 0
        %1619 = vmatprep.subr.bf16.mxu0 0
        %1620 = vmatpush2.bf16.msra.mxu0 0
        %1621 = vmatprep.mubr.bf16.mxu0 0
        %1622 = vmatmul.mubr.bf16.gmra.mxu0 %v1587
        %v1623 = vpop.f32.mrf.mxu0
        %v1624 = vadd.f32 0.0, %v1623
        %v1625 = vpop.f32.mrf.mxu0
        %v1626 = vpop.f32.mrf.mxu0
        %v1627 = vpop.f32.mrf.mxu0
        %1628 = vdwg.mxu0
        %v1629 = vadd.f32 %v1285, %v1624
        %s1630 = scalar_lea.vmem [#allocation8], 48
        %v1631 = vld [vmem:[%s1630] sm:$0xf]
        %v1632 = vld [vmem:[%s1630 + $0x4] sm:$0xf]
        %v1633 = vld [vmem:[%s1630 + $0x8] sm:$0xf]
        %v1634 = vld [vmem:[%s1630 + $0xc] sm:$0xf]
        %v1639 = vunpack.c.l.b16 %v1631
        %v1640 = vunpack.c.l.b16 %v1632
        %v1641 = vunpack.c.l.b16 %v1633
        %v1642 = vunpack.c.l.b16 %v1634
        %v1643 = vpack.c.b16 %v1640, %v1639
        %v1644 = vpack.c.b16 %v1642, %v1641
        %1647 = vmatprep.subr.bf16.mxu0 0
        %1648 = vmatpush1.bf16.msra.mxu0 0
        %1649 = vmatprep.subr.bf16.mxu0 0
        %1650 = vmatpush1.bf16.msra.mxu0 0
        %1651 = vmatprep.subr.bf16.mxu0 0
        %1652 = vmatpush1.bf16.msra.mxu0 0
        %1653 = vmatprep.subr.bf16.mxu0 0
        %1654 = vmatpush1.bf16.msra.mxu0 0
        %1655 = vmatprep.subr.bf16.mxu0 0
        %1656 = vmatpush1.bf16.msra.mxu0 0
        %1657 = vmatprep.subr.bf16.mxu0 0
        %1658 = vmatpush1.bf16.msra.mxu0 0
        %1659 = vmatprep.subr.bf16.mxu0 0
        %1660 = vmatpush1.bf16.msra.mxu0 %v1644
        %1661 = vmatprep.subr.bf16.mxu0 0
        %1662 = vmatpush1.bf16.msra.mxu0 %v1643
        %1663 = vmatprep.subr.bf16.mxu0 0
        %1664 = vmatpush2.bf16.msra.mxu0 0
        %1665 = vmatprep.subr.bf16.mxu0 0
        %1666 = vmatpush2.bf16.msra.mxu0 0
        %1667 = vmatprep.subr.bf16.mxu0 0
        %1668 = vmatpush2.bf16.msra.mxu0 0
        %1669 = vmatprep.subr.bf16.mxu0 0
        %1670 = vmatpush2.bf16.msra.mxu0 0
        %1671 = vmatprep.subr.bf16.mxu0 0
        %1672 = vmatpush2.bf16.msra.mxu0 0
        %1673 = vmatprep.subr.bf16.mxu0 0
        %1674 = vmatpush2.bf16.msra.mxu0 0
        %1675 = vmatprep.subr.bf16.mxu0 0
        %1676 = vmatpush2.bf16.msra.mxu0 0
        %1677 = vmatprep.subr.bf16.mxu0 0
        %1678 = vmatpush2.bf16.msra.mxu0 0
        %1679 = vmatprep.mubr.bf16.mxu0 0
        %1680 = vmatmul.mubr.bf16.gmra.mxu0 %v628
        %v1681 = vpop.f32.mrf.mxu0
        %v1682 = vadd.f32 0.0, %v1681
        %v1683 = vpop.f32.mrf.mxu0
        %v1684 = vpop.f32.mrf.mxu0
        %v1685 = vpop.f32.mrf.mxu0
        %1686 = vdwg.mxu0
        %s1687 = scalar_lea.vmem [#allocation10], 48
        %v1688 = vld [vmem:[%s1687] sm:$0xf]
        %v1689 = vld [vmem:[%s1687 + $0x4] sm:$0xf]
        %v1690 = vld [vmem:[%s1687 + $0x8] sm:$0xf]
        %v1691 = vld [vmem:[%s1687 + $0xc] sm:$0xf]
        %v1696 = vunpack.c.l.b16 %v1688
        %v1697 = vunpack.c.l.b16 %v1689
        %v1698 = vunpack.c.l.b16 %v1690
        %v1699 = vunpack.c.l.b16 %v1691
        %v1700 = vpack.c.b16 %v1697, %v1696
        %v1701 = vpack.c.b16 %v1699, %v1698
        %1704 = vmatprep.subr.bf16.mxu0 0
        %1705 = vmatpush1.bf16.msra.mxu0 0
        %1706 = vmatprep.subr.bf16.mxu0 0
        %1707 = vmatpush1.bf16.msra.mxu0 0
        %1708 = vmatprep.subr.bf16.mxu0 0
        %1709 = vmatpush1.bf16.msra.mxu0 0
        %1710 = vmatprep.subr.bf16.mxu0 0
        %1711 = vmatpush1.bf16.msra.mxu0 0
        %1712 = vmatprep.subr.bf16.mxu0 0
        %1713 = vmatpush1.bf16.msra.mxu0 0
        %1714 = vmatprep.subr.bf16.mxu0 0
        %1715 = vmatpush1.bf16.msra.mxu0 0
        %1716 = vmatprep.subr.bf16.mxu0 0
        %1717 = vmatpush1.bf16.msra.mxu0 %v1701
        %1718 = vmatprep.subr.bf16.mxu0 0
        %1719 = vmatpush1.bf16.msra.mxu0 %v1700
        %1720 = vmatprep.subr.bf16.mxu0 0
        %1721 = vmatpush2.bf16.msra.mxu0 0
        %1722 = vmatprep.subr.bf16.mxu0 0
        %1723 = vmatpush2.bf16.msra.mxu0 0
        %1724 = vmatprep.subr.bf16.mxu0 0
        %1725 = vmatpush2.bf16.msra.mxu0 0
        %1726 = vmatprep.subr.bf16.mxu0 0
        %1727 = vmatpush2.bf16.msra.mxu0 0
        %1728 = vmatprep.subr.bf16.mxu0 0
        %1729 = vmatpush2.bf16.msra.mxu0 0
        %1730 = vmatprep.subr.bf16.mxu0 0
        %1731 = vmatpush2.bf16.msra.mxu0 0
        %1732 = vmatprep.subr.bf16.mxu0 0
        %1733 = vmatpush2.bf16.msra.mxu0 0
        %1734 = vmatprep.subr.bf16.mxu0 0
        %1735 = vmatpush2.bf16.msra.mxu0 0
        %1736 = vmatprep.mubr.bf16.mxu0 0
        %1737 = vmatmul.mubr.bf16.gmra.mxu0 %v628
        %v1738 = vpop.f32.mrf.mxu0
        %v1739 = vadd.f32 0.0, %v1738
        %v1740 = vpop.f32.mrf.mxu0
        %v1741 = vpop.f32.mrf.mxu0
        %v1742 = vpop.f32.mrf.mxu0
        %1743 = vdwg.mxu0
        %s1744 = scalar_lea.vmem [#allocation11], 48
        %v1745 = vld [vmem:[%s1744] sm:$0xf]
        %v1746 = vld [vmem:[%s1744 + $0x4] sm:$0xf]
        %v1747 = vld [vmem:[%s1744 + $0x8] sm:$0xf]
        %v1748 = vld [vmem:[%s1744 + $0xc] sm:$0xf]
        %v1753 = vunpack.c.l.b16 %v1745
        %v1754 = vunpack.c.l.b16 %v1746
        %v1755 = vunpack.c.l.b16 %v1747
        %v1756 = vunpack.c.l.b16 %v1748
        %v1757 = vpack.c.b16 %v1754, %v1753
        %v1758 = vpack.c.b16 %v1756, %v1755
        %1761 = vmatprep.subr.bf16.mxu0 0
        %1762 = vmatpush1.bf16.msra.mxu0 0
        %1763 = vmatprep.subr.bf16.mxu0 0
        %1764 = vmatpush1.bf16.msra.mxu0 0
        %1765 = vmatprep.subr.bf16.mxu0 0
        %1766 = vmatpush1.bf16.msra.mxu0 0
        %1767 = vmatprep.subr.bf16.mxu0 0
        %1768 = vmatpush1.bf16.msra.mxu0 0
        %1769 = vmatprep.subr.bf16.mxu0 0
        %1770 = vmatpush1.bf16.msra.mxu0 0
        %1771 = vmatprep.subr.bf16.mxu0 0
        %1772 = vmatpush1.bf16.msra.mxu0 0
        %1773 = vmatprep.subr.bf16.mxu0 0
        %1774 = vmatpush1.bf16.msra.mxu0 %v1758
        %1775 = vmatprep.subr.bf16.mxu0 0
        %1776 = vmatpush1.bf16.msra.mxu0 %v1757
        %1777 = vmatprep.subr.bf16.mxu0 0
        %1778 = vmatpush2.bf16.msra.mxu0 0
        %1779 = vmatprep.subr.bf16.mxu0 0
        %1780 = vmatpush2.bf16.msra.mxu0 0
        %1781 = vmatprep.subr.bf16.mxu0 0
        %1782 = vmatpush2.bf16.msra.mxu0 0
        %1783 = vmatprep.subr.bf16.mxu0 0
        %1784 = vmatpush2.bf16.msra.mxu0 0
        %1785 = vmatprep.subr.bf16.mxu0 0
        %1786 = vmatpush2.bf16.msra.mxu0 0
        %1787 = vmatprep.subr.bf16.mxu0 0
        %1788 = vmatpush2.bf16.msra.mxu0 0
        %1789 = vmatprep.subr.bf16.mxu0 0
        %1790 = vmatpush2.bf16.msra.mxu0 0
        %1791 = vmatprep.subr.bf16.mxu0 0
        %1792 = vmatpush2.bf16.msra.mxu0 0
        %1793 = vmatprep.mubr.bf16.mxu0 0
        %1794 = vmatmul.mubr.bf16.gmra.mxu0 %v628
        %v1795 = vpop.f32.mrf.mxu0
        %v1796 = vadd.f32 0.0, %v1795
        %v1797 = vpop.f32.mrf.mxu0
        %v1798 = vpop.f32.mrf.mxu0
        %v1799 = vpop.f32.mrf.mxu0
        %1800 = vdwg.mxu0
        %v1801 = vpack.c.bf16 %v1682, %v1682
        %v1802 = vpack.c.bf16 %v1739, %v1739
        %v1803 = vpack.c.bf16 %v1796, %v1796
        %v1805 = vsel %vm581, %v1801, 0
        %v1808 = vsel %vm581, %v1802, 0
        %1810 = vmatprep.subr.bf16.mxu0 0
        %1811 = vmatpush1.bf16.xpose.msra.mxu0 0
        %1812 = vmatprep.subr.bf16.mxu0 0
        %1813 = vmatpush1.bf16.xpose.msra.mxu0 0
        %1814 = vmatprep.subr.bf16.mxu0 0
        %1815 = vmatpush1.bf16.xpose.msra.mxu0 0
        %1816 = vmatprep.subr.bf16.mxu0 0
        %1817 = vmatpush1.bf16.xpose.msra.mxu0 0
        %1818 = vmatprep.subr.bf16.mxu0 0
        %1819 = vmatpush1.bf16.xpose.msra.mxu0 0
        %1820 = vmatprep.subr.bf16.mxu0 0
        %1821 = vmatpush1.bf16.xpose.msra.mxu0 0
        %1822 = vmatprep.subr.bf16.mxu0 0
        %1823 = vmatpush1.bf16.xpose.msra.mxu0 0
        %1824 = vmatprep.subr.bf16.mxu0 0
        %1825 = vmatpush1.bf16.xpose.msra.mxu0 %v1808
        %1826 = vmatprep.subr.bf16.mxu0 0
        %1827 = vmatpush2.bf16.xpose.msra.mxu0 0
        %1828 = vmatprep.subr.bf16.mxu0 0
        %1829 = vmatpush2.bf16.xpose.msra.mxu0 0
        %1830 = vmatprep.subr.bf16.mxu0 0
        %1831 = vmatpush2.bf16.xpose.msra.mxu0 0
        %1832 = vmatprep.subr.bf16.mxu0 0
        %1833 = vmatpush2.bf16.xpose.msra.mxu0 0
        %1834 = vmatprep.subr.bf16.mxu0 0
        %1835 = vmatpush2.bf16.xpose.msra.mxu0 0
        %1836 = vmatprep.subr.bf16.mxu0 0
        %1837 = vmatpush2.bf16.xpose.msra.mxu0 0
        %1838 = vmatprep.subr.bf16.mxu0 0
        %1839 = vmatpush2.bf16.xpose.msra.mxu0 0
        %1840 = vmatprep.subr.bf16.mxu0 0
        %1841 = vmatpush2.bf16.xpose.msra.mxu0 0
        %1842 = vmatprep.mubr.bf16.mxu0 0
        %1843 = vmatmul.mubr.bf16.gmra.mxu0 %v1805
        %v1844 = vpop.f32.mrf.mxu0
        %v1845 = vadd.f32 0.0, %v1844
        %v1846 = vpop.f32.mrf.mxu0
        %v1847 = vpop.f32.mrf.mxu0
        %v1848 = vpop.f32.mrf.mxu0
        %1849 = vdwg.mxu0
        %v1850 = vsel %vm831, %v1845, -inf
        %1851 = vmax.xlane.f32.xlu0 %v1850
        %v1852 = vpop.xlane.xlu0 %1851
        %v1853 = vsub.f32 %v1845, %v1852
        %v1854 = vmul.f32 %v1853, 1.442695
        %v1855 = vpow.pop %v1854
        %v1856 = vsel %vm831, %v1855, 0.0
        %1857 = vadd.xlane.f32.xlu0 %v1856
        %v1858 = vpop.xlane.xlu0 %1857
        %v1859 = vrcp.pop %v1858
        %v1860 = vmul.f32 %v1855, %v1859
        %v1861 = vpack.c.bf16 %v1860, %v1860
        %v1863 = vsel %vm831, %v1861, 0
        %v1866 = vsel %vm847, %v1803, 0
        %1868 = vmatprep.subr.bf16.mxu0 0
        %1869 = vmatpush1.bf16.msra.mxu0 0
        %1870 = vmatprep.subr.bf16.mxu0 0
        %1871 = vmatpush1.bf16.msra.mxu0 0
        %1872 = vmatprep.subr.bf16.mxu0 0
        %1873 = vmatpush1.bf16.msra.mxu0 0
        %1874 = vmatprep.subr.bf16.mxu0 0
        %1875 = vmatpush1.bf16.msra.mxu0 0
        %1876 = vmatprep.subr.bf16.mxu0 0
        %1877 = vmatpush1.bf16.msra.mxu0 0
        %1878 = vmatprep.subr.bf16.mxu0 0
        %1879 = vmatpush1.bf16.msra.mxu0 0
        %1880 = vmatprep.subr.bf16.mxu0 0
        %1881 = vmatpush1.bf16.msra.mxu0 0
        %1882 = vmatprep.subr.bf16.mxu0 0
        %1883 = vmatpush1.bf16.msra.mxu0 %v1866
        %1884 = vmatprep.subr.bf16.mxu0 0
        %1885 = vmatpush2.bf16.msra.mxu0 0
        %1886 = vmatprep.subr.bf16.mxu0 0
        %1887 = vmatpush2.bf16.msra.mxu0 0
        %1888 = vmatprep.subr.bf16.mxu0 0
        %1889 = vmatpush2.bf16.msra.mxu0 0
        %1890 = vmatprep.subr.bf16.mxu0 0
        %1891 = vmatpush2.bf16.msra.mxu0 0
        %1892 = vmatprep.subr.bf16.mxu0 0
        %1893 = vmatpush2.bf16.msra.mxu0 0
        %1894 = vmatprep.subr.bf16.mxu0 0
        %1895 = vmatpush2.bf16.msra.mxu0 0
        %1896 = vmatprep.subr.bf16.mxu0 0
        %1897 = vmatpush2.bf16.msra.mxu0 0
        %1898 = vmatprep.subr.bf16.mxu0 0
        %1899 = vmatpush2.bf16.msra.mxu0 0
        %1900 = vmatprep.mubr.bf16.mxu0 0
        %1901 = vmatmul.mubr.bf16.gmra.mxu0 %v1863
        %v1902 = vpop.f32.mrf.mxu0
        %v1903 = vadd.f32 0.0, %v1902
        %v1904 = vpop.f32.mrf.mxu0
        %v1905 = vpop.f32.mrf.mxu0
        %v1906 = vpop.f32.mrf.mxu0
        %1907 = vdwg.mxu0
        %v1908 = vpack.c.bf16 %v1903, %v1903
        %s1909 = scalar_lea.vmem [#allocation13], 48
        %v1910 = vld [vmem:[%s1909] sm:$0xf]
        %v1911 = vld [vmem:[%s1909 + $0x4] sm:$0xf]
        %v1912 = vld [vmem:[%s1909 + $0x8] sm:$0xf]
        %v1913 = vld [vmem:[%s1909 + $0xc] sm:$0xf]
        %v1918 = vunpack.c.l.b16 %v1910
        %v1919 = vunpack.c.l.b16 %v1911
        %v1920 = vunpack.c.l.b16 %v1912
        %v1921 = vunpack.c.l.b16 %v1913
        %v1922 = vpack.c.b16 %v1919, %v1918
        %v1923 = vpack.c.b16 %v1921, %v1920
        %v1927 = vsel %vm581, %v1908, 0
        %1929 = vmatprep.subr.bf16.mxu0 0
        %1930 = vmatpush1.bf16.msra.mxu0 0
        %1931 = vmatprep.subr.bf16.mxu0 0
        %1932 = vmatpush1.bf16.msra.mxu0 0
        %1933 = vmatprep.subr.bf16.mxu0 0
        %1934 = vmatpush1.bf16.msra.mxu0 0
        %1935 = vmatprep.subr.bf16.mxu0 0
        %1936 = vmatpush1.bf16.msra.mxu0 0
        %1937 = vmatprep.subr.bf16.mxu0 0
        %1938 = vmatpush1.bf16.msra.mxu0 0
        %1939 = vmatprep.subr.bf16.mxu0 0
        %1940 = vmatpush1.bf16.msra.mxu0 0
        %1941 = vmatprep.subr.bf16.mxu0 0
        %1942 = vmatpush1.bf16.msra.mxu0 %v1923
        %1943 = vmatprep.subr.bf16.mxu0 0
        %1944 = vmatpush1.bf16.msra.mxu0 %v1922
        %1945 = vmatprep.subr.bf16.mxu0 0
        %1946 = vmatpush2.bf16.msra.mxu0 0
        %1947 = vmatprep.subr.bf16.mxu0 0
        %1948 = vmatpush2.bf16.msra.mxu0 0
        %1949 = vmatprep.subr.bf16.mxu0 0
        %1950 = vmatpush2.bf16.msra.mxu0 0
        %1951 = vmatprep.subr.bf16.mxu0 0
        %1952 = vmatpush2.bf16.msra.mxu0 0
        %1953 = vmatprep.subr.bf16.mxu0 0
        %1954 = vmatpush2.bf16.msra.mxu0 0
        %1955 = vmatprep.subr.bf16.mxu0 0
        %1956 = vmatpush2.bf16.msra.mxu0 0
        %1957 = vmatprep.subr.bf16.mxu0 0
        %1958 = vmatpush2.bf16.msra.mxu0 0
        %1959 = vmatprep.subr.bf16.mxu0 0
        %1960 = vmatpush2.bf16.msra.mxu0 0
        %1961 = vmatprep.mubr.bf16.mxu0 0
        %1962 = vmatmul.mubr.bf16.gmra.mxu0 %v1927
        %v1963 = vpop.f32.mrf.mxu0
        %v1964 = vadd.f32 0.0, %v1963
        %v1965 = vpop.f32.mrf.mxu0
        %v1966 = vpop.f32.mrf.mxu0
        %v1967 = vpop.f32.mrf.mxu0
        %1968 = vdwg.mxu0
        %v1969 = vadd.f32 %v1629, %v1964
        %v1970 = vadd.f32 %v1969, %v609
        %v1971 = vld [vmem:[%s10] sm:$0x1]
        %v1972 = vld [vmem:[%s11] sm:$0x1]
        %v1973 = vsel %vm581, %v1970, 0.0
        %1974 = vadd.xlane.f32.xlu0 %v1973
        %v1975 = vpop.xlane.xlu0 %1974
        %v1976 = vmul.f32 %v1975, %v585
        %v1977 = vsub.f32 %v1970, %v1976
        %v1978 = vmul.f32 %v1977, %v1977
        %v1979 = vsel %vm581, %v1978, 0.0
        %1980 = vadd.xlane.f32.xlu0 %v1979
        %v1981 = vpop.xlane.xlu0 %1980
        %v1982 = vmul.f32 %v1981, %v585
        %v1983 = vadd.f32 %v1982, 1e-06
        %v1984 = vrsqrt.pop %v1983
        %v1985 = vmul.f32 %v1977, %v1984
        %v1987 = vlaneseq
        %v1988 = vshrl.u32 %v1987, 7
        %v1989 = vsub.s32 0, %v1988
        %v1990 = vrot.slane %v1971, %v1989
        %v1992 = vmul.f32 %v1985, %v1990
        %v1994 = vlaneseq
        %v1995 = vshrl.u32 %v1994, 7
        %v1996 = vsub.s32 0, %v1995
        %v1997 = vrot.slane %v1972, %v1996
        %v1999 = vadd.f32 %v1992, %v1997
        %2000 = vst.msk [vmem:[%s513] sm:$0xff] %vm581, %v1999
        %s2001 = sand.u32 %s297, 1
        %s2002 = scalar_lea.sflag [#allocation4], %s2001
        %s2003 = sand.u32 %s297, 1
        %s2004 = smul.addr %s2003, 8
        %s2005 = scalar_lea.vmem [#allocation14], %s2004
        // Predicated region
        $region97: #{tpu_custom_call.1} parent=67 // pred_check
          %p2006 = pneg %p307
        $region98: #{tpu_custom_call.1} parent=67 // pred_check_branch
          %2008 = sbr.rel (%p2006) target = $region100
        $region99: #{tpu_custom_call.1} parent=67 // pred_region
          %s2010 = ssub.s32 128, 128
          %2011 = vsyncadd %s2002, %s2010
          %s2012 = smul.addr %s32, 128
          %s2013 = scalar_lea.hbm %s12, %s2012
          %s2015 = sshll.u32 %s2005, 4
          %s2016 = int_to_ptr.vmem [resolvable:$true] %s2015
          %2018 = dma.vmem_to_hbm [thread:$0]  %s2016, 128, %s2013, %s2002
        $region100: #{tpu_custom_call.1} parent=67 // pred_fallthru
          _
      $region68: #{tpu_custom_call.1} parent=5 // pred_fallthru
        _
      %p2019 = scmp.le.s32.totalorder 2, %s27
      // Predicated region
      $region101: #{tpu_custom_call.1} parent=5 // pred_check
        %p2020 = pneg %p2019
      $region102: #{tpu_custom_call.1} parent=5 // pred_check_branch
        %2022 = sbr.rel (%p2020) target = $region104
      $region103: #{tpu_custom_call.1} parent=5 // pred_region
        %s2023 = ssub.s32 %s27, 2
        // Predicated region
        $region105: #{tpu_custom_call.1} parent=103 // pred_check
          %p2024 = pneg %p313
        $region106: #{tpu_custom_call.1} parent=103 // pred_check_branch
          %2026 = sbr.rel (%p2024) target = $region108
        $region107: #{tpu_custom_call.1} parent=103 // pred_region
          %s2027 = sand.u32 %s298, 1
          %s2028 = scalar_lea.sflag [#allocation4], %s2027
          %s2029 = sand.u32 %s298, 1
          %s2030 = smul.addr %s2029, 8
          %s2031 = scalar_lea.vmem [#allocation14], %s2030
          %2032 = dma.done %s2028, 128
        $region108: #{tpu_custom_call.1} parent=103 // pred_fallthru
          _
      $region104: #{tpu_custom_call.1} parent=5 // pred_fallthru
        _
    $region6: #{tpu_custom_call.1} parent=1 // loop_footer
      %s31 = sadd.s32 1, %s27
    $region7: #{tpu_custom_call.1} parent=1 // loop_footer_branch
      %26 = sbr.rel target = $region3
    $region8: #{tpu_custom_call.1} parent=1 // loop_exit
      _
    %2033 = vsyncpa [#allocation3], 1
    %s2034 = scalar_lea.sflag [#allocation3], 1
    %2035 = vsyncpa %s2034, 1
    %2036 = vsyncpa [#allocation6], 1
    %2037 = vsyncpa [#allocation9], 1
    %2038 = vsyncpa [#allocation12], 1
    %2039 = vsyncpa [#allocation4], 1
    %s2040 = scalar_lea.sflag [#allocation4], 1
    %2041 = vsyncpa %s2040, 1

</llo_original>
